<compile_context>
chip_gen: v5e
topology: v5e:2x2
jax: 0.10.0
libtpu: 0.0.40
codegen_flags: <defaults>
</compile_context>

<pallas_src>
import jax
import jax.numpy as jnp
from jax.experimental import pallas as pl
from jax.experimental.pallas import tpu as pltpu  # noqa: F401  (TPU backend assumed)

# ---- synthetic small-BERT config ------------------------------------------------
VOCAB = 128
MAX_POS = 64
TYPE_VOCAB = 2
H = 32            # hidden size
NH = 2            # attention heads
HD = H // NH      # head dim
FF = 64           # intermediate (FFN) size
NLAYERS = 2
NUM_LABELS = 3
LN_EPS = 1e-12
B, S = 2, 8


# ---- in-kernel helpers -----------------------------------------------------------
def _ln(x, gamma, beta):
    mu = jnp.mean(x, axis=-1, keepdims=True)
    var = jnp.mean((x - mu) ** 2, axis=-1, keepdims=True)
    return (x - mu) * jax.lax.rsqrt(var + LN_EPS) * gamma + beta


def _gelu(x):
    # TODO(synk): HF BERT uses exact erf-GELU; tanh approximation is used here for a
    #             guaranteed Mosaic lowering (small systematic drift vs. the checkpoint).
    return jax.nn.gelu(x, approximate=True)


# ---- fused Pallas kernel (entire forward after the embedding gather) ----------------
def _teacher_fused_kernel(emb_ref, mask_ref,
                          emb_g_ref, emb_b_ref,
                          wq_ref, bq_ref, wk_ref, bk_ref, wv_ref, bv_ref,
                          wo_ref, bo_ref, ln1_g_ref, ln1_b_ref,
                          wi_ref, bi_ref, w2_ref, b2_ref, ln2_g_ref, ln2_b_ref,
                          pool_w_ref, pool_b_ref, cls_w_ref, cls_b_ref,
                          hs_ref, logits_ref):
    nlayers, nheads, hdim, head_dim = wq_ref.shape
    tokens = emb_ref.shape[0]                     # B * S (flattened token axis)
    nbatch = logits_ref.shape[0]
    seq = tokens // nbatch

    mask = mask_ref[...]                          # (B*S, B*S) additive: block-diag + padding
    scale = 1.0 / jnp.sqrt(jnp.float32(head_dim))

    # --- embedding LayerNorm (embedding sum arrives pre-added from the JAX gather) ---
    hidden = _ln(emb_ref[...].astype(jnp.float32), emb_g_ref[...], emb_b_ref[...])
    hs_ref[0] = hidden.astype(hs_ref.dtype)

    # --- encoder layers: static unroll, everything resident in VMEM ---
    for l in range(nlayers):
        x_in = hidden

        # self-attention with per-head weight blocks: no lane slices, no head concat.
        attn = jnp.zeros((tokens, hdim), jnp.float32)
        for h in range(nheads):
            qh = jnp.dot(x_in, wq_ref[l, h], preferred_element_type=jnp.float32) + bq_ref[l, h]
            kh = jnp.dot(x_in, wk_ref[l, h], preferred_element_type=jnp.float32) + bk_ref[l, h]
            vh = jnp.dot(x_in, wv_ref[l, h], preferred_element_type=jnp.float32) + bv_ref[l, h]

            scores = jnp.dot(qh, kh.T, preferred_element_type=jnp.float32) * scale + mask
            scores = scores - jnp.max(scores, axis=-1, keepdims=True)
            p = jnp.exp(scores)
            p = p * pl.reciprocal(jnp.sum(p, axis=-1, keepdims=True), approx=True)

            ctx_h = jnp.dot(p, vh, preferred_element_type=jnp.float32)        # (B*S, HD)
            # fold head context straight into the output projection (Wo row block of head h)
            attn = attn + jnp.dot(ctx_h, wo_ref[l, h], preferred_element_type=jnp.float32)

        attn = attn + bo_ref[l]
        h1 = _ln(attn + x_in, ln1_g_ref[l], ln1_b_ref[l])

        # feed-forward
        ff = _gelu(jnp.dot(h1, wi_ref[l], preferred_element_type=jnp.float32) + bi_ref[l])
        ff = jnp.dot(ff, w2_ref[l], preferred_element_type=jnp.float32) + b2_ref[l]
        hidden = _ln(ff + h1, ln2_g_ref[l], ln2_b_ref[l])

        hs_ref[l + 1] = hidden.astype(hs_ref.dtype)

    # --- pooler (tanh on [CLS]) + classifier.  CLS rows are picked with a tiny
    #     selection matmul (MXU) instead of a strided sublane gather. ---
    row = jax.lax.broadcasted_iota(jnp.int32, (nbatch, tokens), 0)
    col = jax.lax.broadcasted_iota(jnp.int32, (nbatch, tokens), 1)
    sel = (col == row * seq).astype(jnp.float32)                        # (B, B*S)
    cls = jnp.dot(sel, hidden, preferred_element_type=jnp.float32)      # (B, H)

    pooled = jnp.tanh(jnp.dot(cls, pool_w_ref[...], preferred_element_type=jnp.float32)
                      + pool_b_ref[...])
    logits = jnp.dot(pooled, cls_w_ref[...], preferred_element_type=jnp.float32) + cls_b_ref[...]
    logits_ref[...] = logits.astype(logits_ref.dtype)


# ---- wrapper ----------------------------------------------------------------------
def teacher_fused_pallas(emb_flat, add_mask, params, nbatch):
    tokens, hdim = emb_flat.shape
    return pl.pallas_call(
        _teacher_fused_kernel,
        out_shape=(jax.ShapeDtypeStruct((NLAYERS + 1, tokens, hdim), jnp.float32),
                   jax.ShapeDtypeStruct((nbatch, NUM_LABELS), jnp.float32)),
    )(emb_flat, add_mask,
      params["emb_ln_g"], params["emb_ln_b"],
      params["wq"], params["bq"], params["wk"], params["bk"],
      params["wv"], params["bv"], params["wo"], params["bo"],
      params["ln1_g"], params["ln1_b"],
      params["wi"], params["bi"], params["w2"], params["b2"],
      params["ln2_g"], params["ln2_b"],
      params["pool_w"], params["pool_b"], params["cls_w"], params["cls_b"])


# ---- parameters -------------------------------------------------------------------
def init_params(key):
    def nrm(k, shape, scale=0.02):
        return scale * jax.random.normal(k, shape, dtype=jnp.float32)

    keys = iter(jax.random.split(key, 64))

    def split_heads_w(w):    # (H, H) -> (NH, H, HD): per-head column block of Wq/Wk/Wv
        return w.reshape(H, NH, HD).transpose(1, 0, 2)

    def split_heads_wo(w):   # (H, H) -> (NH, HD, H): per-head row block of Wo
        return w.reshape(NH, HD, H)

    p = {
        "word_emb": nrm(next(keys), (VOCAB, H)),
        "pos_emb":  nrm(next(keys), (MAX_POS, H)),
        "type_emb": nrm(next(keys), (TYPE_VOCAB, H)),
        "emb_ln_g": jnp.ones((1, H), jnp.float32),
        "emb_ln_b": jnp.zeros((1, H), jnp.float32),
        "pool_w":   nrm(next(keys), (H, H)),
        "pool_b":   jnp.zeros((1, H), jnp.float32),
        "cls_w":    nrm(next(keys), (H, NUM_LABELS)),
        "cls_b":    jnp.zeros((1, NUM_LABELS), jnp.float32),
    }

    wq, wk, wv, wo, wi, w2 = [], [], [], [], [], []
    for _ in range(NLAYERS):
        wq.append(split_heads_w(nrm(next(keys), (H, H))))
        wk.append(split_heads_w(nrm(next(keys), (H, H))))
        wv.append(split_heads_w(nrm(next(keys), (H, H))))
        wo.append(split_heads_wo(nrm(next(keys), (H, H))))
        wi.append(nrm(next(keys), (H, FF)))
        w2.append(nrm(next(keys), (FF, H)))

    p.update({
        "wq": jnp.stack(wq), "wk": jnp.stack(wk), "wv": jnp.stack(wv), "wo": jnp.stack(wo),
        "bq": jnp.zeros((NLAYERS, NH, 1, HD), jnp.float32),
        "bk": jnp.zeros((NLAYERS, NH, 1, HD), jnp.float32),
        "bv": jnp.zeros((NLAYERS, NH, 1, HD), jnp.float32),
        "bo": jnp.zeros((NLAYERS, 1, H), jnp.float32),
        "ln1_g": jnp.ones((NLAYERS, 1, H), jnp.float32),
        "ln1_b": jnp.zeros((NLAYERS, 1, H), jnp.float32),
        "wi": jnp.stack(wi),
        "bi": jnp.zeros((NLAYERS, 1, FF), jnp.float32),
        "w2": jnp.stack(w2),
        "b2": jnp.zeros((NLAYERS, 1, H), jnp.float32),
        "ln2_g": jnp.ones((NLAYERS, 1, H), jnp.float32),
        "ln2_b": jnp.zeros((NLAYERS, 1, H), jnp.float32),
    })
    return p


# ---- forward (mirrors TeacherModel.forward after tokenization) ---------------------
@jax.jit
def teacher_forward(params, input_ids, attention_mask):
    # TODO(synk): string tokenization (BertTokenizer) has no Pallas equivalent;
    #             forward consumes pre-tokenized input_ids / attention_mask.
    bsz, seq = input_ids.shape

    # embedding gather + sum stays in JAX glue (fused by XLA); everything downstream
    # runs inside the single fused Pallas kernel.
    tok = jnp.take(params["word_emb"], input_ids, axis=0)            # (B, S, H)
    pos = params["pos_emb"][:seq][None, :, :]                        # (1, S, H)
    typ = params["type_emb"][0][None, None, :]                       # token_type_ids = 0
    emb = (tok + pos + typ).reshape(bsz * seq, -1)                   # (B*S, H)

    # combined additive attention mask over the flattened token axis:
    # block-diagonal (no cross-example attention) AND key-padding mask.
    ex = jnp.repeat(jnp.arange(bsz), seq)                            # (B*S,)
    same_example = ex[:, None] == ex[None, :]
    key_attended = attention_mask.reshape(-1) > 0
    add_mask = jnp.where(same_example & key_attended[None, :], 0.0, -1e9).astype(jnp.float32)

    hs_flat, logits = teacher_fused_pallas(emb, add_mask, params, bsz)

    # HF ordering: embeddings output first, then each encoder layer.
    hidden_states = tuple(hs_flat[i].reshape(bsz, seq, -1) for i in range(NLAYERS + 1))
    return logits, hidden_states


# ---- main --------------------------------------------------------------------------
if __name__ == "__main__":
    key = jax.random.PRNGKey(0)
    pkey, ikey = jax.random.split(key)
    params = init_params(pkey)

    input_ids = jax.random.randint(ikey, (B, S), 0, VOCAB, dtype=jnp.int32)
    attention_mask = jnp.ones((B, S), jnp.int32).at[1, 6:].set(0)    # pad tail of example 1

    logits, hidden_states = teacher_forward(params, input_ids, attention_mask)
    jax.block_until_ready(logits)
    jax.block_until_ready(hidden_states)

    assert logits.shape == (B, NUM_LABELS)
    assert len(hidden_states) == NLAYERS + 1
    assert all(h.shape == (B, S, H) for h in hidden_states)
    assert bool(jnp.all(jnp.isfinite(logits)))
    print("KERNEL_OK")
</pallas_src>

<mosaic_0001>
module attributes {stable_mosaic.version = 11 : i64} {
  func.func @_teacher_fused_kernel(%arg0: memref<16x32xf32, #tpu.memory_space<vmem>>, %arg1: memref<16x16xf32, #tpu.memory_space<vmem>>, %arg2: memref<1x32xf32, #tpu.memory_space<vmem>>, %arg3: memref<1x32xf32, #tpu.memory_space<vmem>>, %arg4: memref<2x2x32x16xf32, #tpu.memory_space<vmem>>, %arg5: memref<2x2x1x16xf32, #tpu.memory_space<vmem>>, %arg6: memref<2x2x32x16xf32, #tpu.memory_space<vmem>>, %arg7: memref<2x2x1x16xf32, #tpu.memory_space<vmem>>, %arg8: memref<2x2x32x16xf32, #tpu.memory_space<vmem>>, %arg9: memref<2x2x1x16xf32, #tpu.memory_space<vmem>>, %arg10: memref<2x2x16x32xf32, #tpu.memory_space<vmem>>, %arg11: memref<2x1x32xf32, #tpu.memory_space<vmem>>, %arg12: memref<2x1x32xf32, #tpu.memory_space<vmem>>, %arg13: memref<2x1x32xf32, #tpu.memory_space<vmem>>, %arg14: memref<2x32x64xf32, #tpu.memory_space<vmem>>, %arg15: memref<2x1x64xf32, #tpu.memory_space<vmem>>, %arg16: memref<2x64x32xf32, #tpu.memory_space<vmem>>, %arg17: memref<2x1x32xf32, #tpu.memory_space<vmem>>, %arg18: memref<2x1x32xf32, #tpu.memory_space<vmem>>, %arg19: memref<2x1x32xf32, #tpu.memory_space<vmem>>, %arg20: memref<32x32xf32, #tpu.memory_space<vmem>>, %arg21: memref<1x32xf32, #tpu.memory_space<vmem>>, %arg22: memref<32x3xf32, #tpu.memory_space<vmem>>, %arg23: memref<1x3xf32, #tpu.memory_space<vmem>>, %arg24: memref<3x16x32xf32, #tpu.memory_space<vmem>>, %arg25: memref<2x3xf32, #tpu.memory_space<vmem>>) attributes {dimension_semantics = [], scalar_prefetch = 0 : i64, scratch_operands = 0 : i64, tpu.core_type = #tpu.core_type<tc>} {
    %c0 = arith.constant 0 : index
    %c0_0 = arith.constant 0 : index
    %0 = vector.load %arg1[%c0, %c0_0] : memref<16x16xf32, #tpu.memory_space<vmem>>, vector<16x16xf32>
    %cst = arith.constant 1.600000e+01 : f32
    %1 = math.sqrt %cst : f32
    %cst_1 = arith.constant 1.000000e+00 : f32
    %2 = arith.divf %cst_1, %1 : f32
    %c0_2 = arith.constant 0 : index
    %c0_3 = arith.constant 0 : index
    %3 = vector.load %arg0[%c0_2, %c0_3] : memref<16x32xf32, #tpu.memory_space<vmem>>, vector<16x32xf32>
    %c0_4 = arith.constant 0 : index
    %c0_5 = arith.constant 0 : index
    %4 = vector.load %arg2[%c0_4, %c0_5] : memref<1x32xf32, #tpu.memory_space<vmem>>, vector<1x32xf32>
    %c0_6 = arith.constant 0 : index
    %c0_7 = arith.constant 0 : index
    %5 = vector.load %arg3[%c0_6, %c0_7] : memref<1x32xf32, #tpu.memory_space<vmem>>, vector<1x32xf32>
    %cst_8 = arith.constant dense<0.000000e+00> : vector<16xf32>
    %6 = vector.multi_reduction <add>, %3, %cst_8 [1] : vector<16x32xf32> to vector<16xf32>
    %7 = vector.shape_cast %6 : vector<16xf32> to vector<16x1xf32>
    %cst_9 = arith.constant 3.200000e+01 : f32
    %8 = vector.broadcast %cst_9 : f32 to vector<16x1xf32>
    %9 = arith.divf %7, %8 : vector<16x1xf32>
    %10 = vector.broadcast %9 : vector<16x1xf32> to vector<16x32xf32>
    %11 = arith.subf %3, %10 : vector<16x32xf32>
    %12 = arith.mulf %11, %11 : vector<16x32xf32>
    %cst_10 = arith.constant dense<0.000000e+00> : vector<16xf32>
    %13 = vector.multi_reduction <add>, %12, %cst_10 [1] : vector<16x32xf32> to vector<16xf32>
    %14 = vector.shape_cast %13 : vector<16xf32> to vector<16x1xf32>
    %cst_11 = arith.constant 3.200000e+01 : f32
    %15 = vector.broadcast %cst_11 : f32 to vector<16x1xf32>
    %16 = arith.divf %14, %15 : vector<16x1xf32>
    %17 = vector.broadcast %9 : vector<16x1xf32> to vector<16x32xf32>
    %18 = arith.subf %3, %17 : vector<16x32xf32>
    %cst_12 = arith.constant 9.99999996E-13 : f32
    %19 = vector.broadcast %cst_12 : f32 to vector<16x1xf32>
    %20 = arith.addf %16, %19 : vector<16x1xf32>
    %21 = math.rsqrt %20 : vector<16x1xf32>
    %22 = vector.broadcast %21 : vector<16x1xf32> to vector<16x32xf32>
    %23 = arith.mulf %18, %22 : vector<16x32xf32>
    %24 = vector.broadcast %4 : vector<1x32xf32> to vector<16x32xf32>
    %25 = arith.mulf %23, %24 : vector<16x32xf32>
    %26 = vector.broadcast %5 : vector<1x32xf32> to vector<16x32xf32>
    %27 = arith.addf %25, %26 : vector<16x32xf32>
    %c0_13 = arith.constant 0 : index
    %c0_14 = arith.constant 0 : index
    %c0_15 = arith.constant 0 : index
    %28 = vector.load %arg24[%c0_13, %c0_14, %c0_15] : memref<3x16x32xf32, #tpu.memory_space<vmem>>, vector<1x16x32xf32>
    %29 = vector.shape_cast %28 : vector<1x16x32xf32> to vector<16x32xf32>
    %30 = vector.shape_cast %27 : vector<16x32xf32> to vector<1x16x32xf32>
    tpu.vector_store %arg24[%c0_13, %c0_14, %c0_15], %30 {strides = array<i32>} : memref<3x16x32xf32, #tpu.memory_space<vmem>>, vector<1x16x32xf32>,
    %cst_16 = arith.constant 0.000000e+00 : f32
    %31 = vector.broadcast %cst_16 : f32 to vector<16x32xf32>
    %c0_17 = arith.constant 0 : index
    %c0_18 = arith.constant 0 : index
    %c0_19 = arith.constant 0 : index
    %c0_20 = arith.constant 0 : index
    %32 = vector.load %arg4[%c0_17, %c0_18, %c0_19, %c0_20] : memref<2x2x32x16xf32, #tpu.memory_space<vmem>>, vector<1x1x32x16xf32>
    %33 = vector.shape_cast %32 : vector<1x1x32x16xf32> to vector<32x16xf32>
    %cst_21 = arith.constant dense<0.000000e+00> : vector<16x16xf32>
    %34 = tpu.matmul %27, %33, %cst_21 {dimension_numbers = #tpu.dot_dimension_numbers<[1], [0], [0], [1], [0, 0, 1, 1], [], []>} : vector<16x32xf32>, vector<32x16xf32>, vector<16x16xf32> -> vector<16x16xf32>
    %c0_22 = arith.constant 0 : index
    %c0_23 = arith.constant 0 : index
    %c0_24 = arith.constant 0 : index
    %c0_25 = arith.constant 0 : index
    %35 = vector.load %arg5[%c0_22, %c0_23, %c0_24, %c0_25] : memref<2x2x1x16xf32, #tpu.memory_space<vmem>>, vector<1x1x1x16xf32>
    %36 = vector.shape_cast %35 : vector<1x1x1x16xf32> to vector<1x16xf32>
    %37 = vector.broadcast %36 : vector<1x16xf32> to vector<16x16xf32>
    %38 = arith.addf %34, %37 : vector<16x16xf32>
    %c0_26 = arith.constant 0 : index
    %c0_27 = arith.constant 0 : index
    %c0_28 = arith.constant 0 : index
    %c0_29 = arith.constant 0 : index
    %39 = vector.load %arg6[%c0_26, %c0_27, %c0_28, %c0_29] : memref<2x2x32x16xf32, #tpu.memory_space<vmem>>, vector<1x1x32x16xf32>
    %40 = vector.shape_cast %39 : vector<1x1x32x16xf32> to vector<32x16xf32>
    %cst_30 = arith.constant dense<0.000000e+00> : vector<16x16xf32>
    %41 = tpu.matmul %27, %40, %cst_30 {dimension_numbers = #tpu.dot_dimension_numbers<[1], [0], [0], [1], [0, 0, 1, 1], [], []>} : vector<16x32xf32>, vector<32x16xf32>, vector<16x16xf32> -> vector<16x16xf32>
    %c0_31 = arith.constant 0 : index
    %c0_32 = arith.constant 0 : index
    %c0_33 = arith.constant 0 : index
    %c0_34 = arith.constant 0 : index
    %42 = vector.load %arg7[%c0_31, %c0_32, %c0_33, %c0_34] : memref<2x2x1x16xf32, #tpu.memory_space<vmem>>, vector<1x1x1x16xf32>
    %43 = vector.shape_cast %42 : vector<1x1x1x16xf32> to vector<1x16xf32>
    %44 = vector.broadcast %43 : vector<1x16xf32> to vector<16x16xf32>
    %45 = arith.addf %41, %44 : vector<16x16xf32>
    %c0_35 = arith.constant 0 : index
    %c0_36 = arith.constant 0 : index
    %c0_37 = arith.constant 0 : index
    %c0_38 = arith.constant 0 : index
    %46 = vector.load %arg8[%c0_35, %c0_36, %c0_37, %c0_38] : memref<2x2x32x16xf32, #tpu.memory_space<vmem>>, vector<1x1x32x16xf32>
    %47 = vector.shape_cast %46 : vector<1x1x32x16xf32> to vector<32x16xf32>
    %cst_39 = arith.constant dense<0.000000e+00> : vector<16x16xf32>
    %48 = tpu.matmul %27, %47, %cst_39 {dimension_numbers = #tpu.dot_dimension_numbers<[1], [0], [0], [1], [0, 0, 1, 1], [], []>} : vector<16x32xf32>, vector<32x16xf32>, vector<16x16xf32> -> vector<16x16xf32>
    %c0_40 = arith.constant 0 : index
    %c0_41 = arith.constant 0 : index
    %c0_42 = arith.constant 0 : index
    %c0_43 = arith.constant 0 : index
    %49 = vector.load %arg9[%c0_40, %c0_41, %c0_42, %c0_43] : memref<2x2x1x16xf32, #tpu.memory_space<vmem>>, vector<1x1x1x16xf32>
    %50 = vector.shape_cast %49 : vector<1x1x1x16xf32> to vector<1x16xf32>
    %51 = vector.broadcast %50 : vector<1x16xf32> to vector<16x16xf32>
    %52 = arith.addf %48, %51 : vector<16x16xf32>
    %53 = tpu.transpose %45, [1, 0] : vector<16x16xf32> -> vector<16x16xf32>
    %cst_44 = arith.constant dense<0.000000e+00> : vector<16x16xf32>
    %54 = tpu.matmul %38, %53, %cst_44 {dimension_numbers = #tpu.dot_dimension_numbers<[1], [0], [0], [1], [0, 0, 1, 1], [], []>} : vector<16x16xf32>, vector<16x16xf32>, vector<16x16xf32> -> vector<16x16xf32>
    %55 = vector.broadcast %2 : f32 to vector<16x16xf32>
    %56 = arith.mulf %54, %55 : vector<16x16xf32>
    %57 = arith.addf %56, %0 : vector<16x16xf32>
    %cst_45 = arith.constant dense<0xFF800000> : vector<16xf32>
    %58 = vector.multi_reduction <maximumf>, %57, %cst_45 [1] : vector<16x16xf32> to vector<16xf32>
    %59 = vector.shape_cast %58 : vector<16xf32> to vector<16x1xf32>
    %60 = vector.broadcast %59 : vector<16x1xf32> to vector<16x16xf32>
    %61 = arith.subf %57, %60 : vector<16x16xf32>
    %62 = math.exp %61 : vector<16x16xf32>
    %cst_46 = arith.constant dense<0.000000e+00> : vector<16xf32>
    %63 = vector.multi_reduction <add>, %62, %cst_46 [1] : vector<16x16xf32> to vector<16xf32>
    %64 = vector.shape_cast %63 : vector<16xf32> to vector<16x1xf32>
    %65 = tpu.reciprocal %64 {approx = true} : vector<16x1xf32> -> vector<16x1xf32>
    %66 = vector.broadcast %65 : vector<16x1xf32> to vector<16x16xf32>
    %67 = arith.mulf %62, %66 : vector<16x16xf32>
    %cst_47 = arith.constant dense<0.000000e+00> : vector<16x16xf32>
    %68 = tpu.matmul %67, %52, %cst_47 {dimension_numbers = #tpu.dot_dimension_numbers<[1], [0], [0], [1], [0, 0, 1, 1], [], []>} : vector<16x16xf32>, vector<16x16xf32>, vector<16x16xf32> -> vector<16x16xf32>
    %c0_48 = arith.constant 0 : index
    %c0_49 = arith.constant 0 : index
    %c0_50 = arith.constant 0 : index
    %c0_51 = arith.constant 0 : index
    %69 = vector.load %arg10[%c0_48, %c0_49, %c0_50, %c0_51] : memref<2x2x16x32xf32, #tpu.memory_space<vmem>>, vector<1x1x16x32xf32>
    %70 = vector.shape_cast %69 : vector<1x1x16x32xf32> to vector<16x32xf32>
    %cst_52 = arith.constant dense<0.000000e+00> : vector<16x32xf32>
    %71 = tpu.matmul %68, %70, %cst_52 {dimension_numbers = #tpu.dot_dimension_numbers<[1], [0], [0], [1], [0, 0, 1, 1], [], []>} : vector<16x16xf32>, vector<16x32xf32>, vector<16x32xf32> -> vector<16x32xf32>
    %72 = arith.addf %31, %71 : vector<16x32xf32>
    %c0_53 = arith.constant 0 : index
    %c1 = arith.constant 1 : index
    %c0_54 = arith.constant 0 : index
    %c0_55 = arith.constant 0 : index
    %73 = vector.load %arg4[%c0_53, %c1, %c0_54, %c0_55] : memref<2x2x32x16xf32, #tpu.memory_space<vmem>>, vector<1x1x32x16xf32>
    %74 = vector.shape_cast %73 : vector<1x1x32x16xf32> to vector<32x16xf32>
    %cst_56 = arith.constant dense<0.000000e+00> : vector<16x16xf32>
    %75 = tpu.matmul %27, %74, %cst_56 {dimension_numbers = #tpu.dot_dimension_numbers<[1], [0], [0], [1], [0, 0, 1, 1], [], []>} : vector<16x32xf32>, vector<32x16xf32>, vector<16x16xf32> -> vector<16x16xf32>
    %c0_57 = arith.constant 0 : index
    %c1_58 = arith.constant 1 : index
    %c0_59 = arith.constant 0 : index
    %c0_60 = arith.constant 0 : index
    %76 = vector.load %arg5[%c0_57, %c1_58, %c0_59, %c0_60] : memref<2x2x1x16xf32, #tpu.memory_space<vmem>>, vector<1x1x1x16xf32>
    %77 = vector.shape_cast %76 : vector<1x1x1x16xf32> to vector<1x16xf32>
    %78 = vector.broadcast %77 : vector<1x16xf32> to vector<16x16xf32>
    %79 = arith.addf %75, %78 : vector<16x16xf32>
    %c0_61 = arith.constant 0 : index
    %c1_62 = arith.constant 1 : index
    %c0_63 = arith.constant 0 : index
    %c0_64 = arith.constant 0 : index
    %80 = vector.load %arg6[%c0_61, %c1_62, %c0_63, %c0_64] : memref<2x2x32x16xf32, #tpu.memory_space<vmem>>, vector<1x1x32x16xf32>
    %81 = vector.shape_cast %80 : vector<1x1x32x16xf32> to vector<32x16xf32>
    %cst_65 = arith.constant dense<0.000000e+00> : vector<16x16xf32>
    %82 = tpu.matmul %27, %81, %cst_65 {dimension_numbers = #tpu.dot_dimension_numbers<[1], [0], [0], [1], [0, 0, 1, 1], [], []>} : vector<16x32xf32>, vector<32x16xf32>, vector<16x16xf32> -> vector<16x16xf32>
    %c0_66 = arith.constant 0 : index
    %c1_67 = arith.constant 1 : index
    %c0_68 = arith.constant 0 : index
    %c0_69 = arith.constant 0 : index
    %83 = vector.load %arg7[%c0_66, %c1_67, %c0_68, %c0_69] : memref<2x2x1x16xf32, #tpu.memory_space<vmem>>, vector<1x1x1x16xf32>
    %84 = vector.shape_cast %83 : vector<1x1x1x16xf32> to vector<1x16xf32>
    %85 = vector.broadcast %84 : vector<1x16xf32> to vector<16x16xf32>
    %86 = arith.addf %82, %85 : vector<16x16xf32>
    %c0_70 = arith.constant 0 : index
    %c1_71 = arith.constant 1 : index
    %c0_72 = arith.constant 0 : index
    %c0_73 = arith.constant 0 : index
    %87 = vector.load %arg8[%c0_70, %c1_71, %c0_72, %c0_73] : memref<2x2x32x16xf32, #tpu.memory_space<vmem>>, vector<1x1x32x16xf32>
    %88 = vector.shape_cast %87 : vector<1x1x32x16xf32> to vector<32x16xf32>
    %cst_74 = arith.constant dense<0.000000e+00> : vector<16x16xf32>
    %89 = tpu.matmul %27, %88, %cst_74 {dimension_numbers = #tpu.dot_dimension_numbers<[1], [0], [0], [1], [0, 0, 1, 1], [], []>} : vector<16x32xf32>, vector<32x16xf32>, vector<16x16xf32> -> vector<16x16xf32>
    %c0_75 = arith.constant 0 : index
    %c1_76 = arith.constant 1 : index
    %c0_77 = arith.constant 0 : index
    %c0_78 = arith.constant 0 : index
    %90 = vector.load %arg9[%c0_75, %c1_76, %c0_77, %c0_78] : memref<2x2x1x16xf32, #tpu.memory_space<vmem>>, vector<1x1x1x16xf32>
    %91 = vector.shape_cast %90 : vector<1x1x1x16xf32> to vector<1x16xf32>
    %92 = vector.broadcast %91 : vector<1x16xf32> to vector<16x16xf32>
    %93 = arith.addf %89, %92 : vector<16x16xf32>
    %94 = tpu.transpose %86, [1, 0] : vector<16x16xf32> -> vector<16x16xf32>
    %cst_79 = arith.constant dense<0.000000e+00> : vector<16x16xf32>
    %95 = tpu.matmul %79, %94, %cst_79 {dimension_numbers = #tpu.dot_dimension_numbers<[1], [0], [0], [1], [0, 0, 1, 1], [], []>} : vector<16x16xf32>, vector<16x16xf32>, vector<16x16xf32> -> vector<16x16xf32>
    %96 = vector.broadcast %2 : f32 to vector<16x16xf32>
    %97 = arith.mulf %95, %96 : vector<16x16xf32>
    %98 = arith.addf %97, %0 : vector<16x16xf32>
    %cst_80 = arith.constant dense<0xFF800000> : vector<16xf32>
    %99 = vector.multi_reduction <maximumf>, %98, %cst_80 [1] : vector<16x16xf32> to vector<16xf32>
    %100 = vector.shape_cast %99 : vector<16xf32> to vector<16x1xf32>
    %101 = vector.broadcast %100 : vector<16x1xf32> to vector<16x16xf32>
    %102 = arith.subf %98, %101 : vector<16x16xf32>
    %103 = math.exp %102 : vector<16x16xf32>
    %cst_81 = arith.constant dense<0.000000e+00> : vector<16xf32>
    %104 = vector.multi_reduction <add>, %103, %cst_81 [1] : vector<16x16xf32> to vector<16xf32>
    %105 = vector.shape_cast %104 : vector<16xf32> to vector<16x1xf32>
    %106 = tpu.reciprocal %105 {approx = true} : vector<16x1xf32> -> vector<16x1xf32>
    %107 = vector.broadcast %106 : vector<16x1xf32> to vector<16x16xf32>
    %108 = arith.mulf %103, %107 : vector<16x16xf32>
    %cst_82 = arith.constant dense<0.000000e+00> : vector<16x16xf32>
    %109 = tpu.matmul %108, %93, %cst_82 {dimension_numbers = #tpu.dot_dimension_numbers<[1], [0], [0], [1], [0, 0, 1, 1], [], []>} : vector<16x16xf32>, vector<16x16xf32>, vector<16x16xf32> -> vector<16x16xf32>
    %c0_83 = arith.constant 0 : index
    %c1_84 = arith.constant 1 : index
    %c0_85 = arith.constant 0 : index
    %c0_86 = arith.constant 0 : index
    %110 = vector.load %arg10[%c0_83, %c1_84, %c0_85, %c0_86] : memref<2x2x16x32xf32, #tpu.memory_space<vmem>>, vector<1x1x16x32xf32>
    %111 = vector.shape_cast %110 : vector<1x1x16x32xf32> to vector<16x32xf32>
    %cst_87 = arith.constant dense<0.000000e+00> : vector<16x32xf32>
    %112 = tpu.matmul %109, %111, %cst_87 {dimension_numbers = #tpu.dot_dimension_numbers<[1], [0], [0], [1], [0, 0, 1, 1], [], []>} : vector<16x16xf32>, vector<16x32xf32>, vector<16x32xf32> -> vector<16x32xf32>
    %113 = arith.addf %72, %112 : vector<16x32xf32>
    %c0_88 = arith.constant 0 : index
    %c0_89 = arith.constant 0 : index
    %c0_90 = arith.constant 0 : index
    %114 = vector.load %arg11[%c0_88, %c0_89, %c0_90] : memref<2x1x32xf32, #tpu.memory_space<vmem>>, vector<1x1x32xf32>
    %115 = vector.shape_cast %114 : vector<1x1x32xf32> to vector<1x32xf32>
    %116 = vector.broadcast %115 : vector<1x32xf32> to vector<16x32xf32>
    %117 = arith.addf %113, %116 : vector<16x32xf32>
    %118 = arith.addf %117, %27 : vector<16x32xf32>
    %c0_91 = arith.constant 0 : index
    %c0_92 = arith.constant 0 : index
    %c0_93 = arith.constant 0 : index
    %119 = vector.load %arg12[%c0_91, %c0_92, %c0_93] : memref<2x1x32xf32, #tpu.memory_space<vmem>>, vector<1x1x32xf32>
    %120 = vector.shape_cast %119 : vector<1x1x32xf32> to vector<1x32xf32>
    %c0_94 = arith.constant 0 : index
    %c0_95 = arith.constant 0 : index
    %c0_96 = arith.constant 0 : index
    %121 = vector.load %arg13[%c0_94, %c0_95, %c0_96] : memref<2x1x32xf32, #tpu.memory_space<vmem>>, vector<1x1x32xf32>
    %122 = vector.shape_cast %121 : vector<1x1x32xf32> to vector<1x32xf32>
    %cst_97 = arith.constant dense<0.000000e+00> : vector<16xf32>
    %123 = vector.multi_reduction <add>, %118, %cst_97 [1] : vector<16x32xf32> to vector<16xf32>
    %124 = vector.shape_cast %123 : vector<16xf32> to vector<16x1xf32>
    %cst_98 = arith.constant 3.200000e+01 : f32
    %125 = vector.broadcast %cst_98 : f32 to vector<16x1xf32>
    %126 = arith.divf %124, %125 : vector<16x1xf32>
    %127 = vector.broadcast %126 : vector<16x1xf32> to vector<16x32xf32>
    %128 = arith.subf %118, %127 : vector<16x32xf32>
    %129 = arith.mulf %128, %128 : vector<16x32xf32>
    %cst_99 = arith.constant dense<0.000000e+00> : vector<16xf32>
    %130 = vector.multi_reduction <add>, %129, %cst_99 [1] : vector<16x32xf32> to vector<16xf32>
    %131 = vector.shape_cast %130 : vector<16xf32> to vector<16x1xf32>
    %cst_100 = arith.constant 3.200000e+01 : f32
    %132 = vector.broadcast %cst_100 : f32 to vector<16x1xf32>
    %133 = arith.divf %131, %132 : vector<16x1xf32>
    %134 = vector.broadcast %126 : vector<16x1xf32> to vector<16x32xf32>
    %135 = arith.subf %118, %134 : vector<16x32xf32>
    %cst_101 = arith.constant 9.99999996E-13 : f32
    %136 = vector.broadcast %cst_101 : f32 to vector<16x1xf32>
    %137 = arith.addf %133, %136 : vector<16x1xf32>
    %138 = math.rsqrt %137 : vector<16x1xf32>
    %139 = vector.broadcast %138 : vector<16x1xf32> to vector<16x32xf32>
    %140 = arith.mulf %135, %139 : vector<16x32xf32>
    %141 = vector.broadcast %120 : vector<1x32xf32> to vector<16x32xf32>
    %142 = arith.mulf %140, %141 : vector<16x32xf32>
    %143 = vector.broadcast %122 : vector<1x32xf32> to vector<16x32xf32>
    %144 = arith.addf %142, %143 : vector<16x32xf32>
    %c0_102 = arith.constant 0 : index
    %c0_103 = arith.constant 0 : index
    %c0_104 = arith.constant 0 : index
    %145 = vector.load %arg14[%c0_102, %c0_103, %c0_104] : memref<2x32x64xf32, #tpu.memory_space<vmem>>, vector<1x32x64xf32>
    %146 = vector.shape_cast %145 : vector<1x32x64xf32> to vector<32x64xf32>
    %cst_105 = arith.constant dense<0.000000e+00> : vector<16x64xf32>
    %147 = tpu.matmul %144, %146, %cst_105 {dimension_numbers = #tpu.dot_dimension_numbers<[1], [0], [0], [1], [0, 0, 1, 1], [], []>} : vector<16x32xf32>, vector<32x64xf32>, vector<16x64xf32> -> vector<16x64xf32>
    %c0_106 = arith.constant 0 : index
    %c0_107 = arith.constant 0 : index
    %c0_108 = arith.constant 0 : index
    %148 = vector.load %arg15[%c0_106, %c0_107, %c0_108] : memref<2x1x64xf32, #tpu.memory_space<vmem>>, vector<1x1x64xf32>
    %149 = vector.shape_cast %148 : vector<1x1x64xf32> to vector<1x64xf32>
    %150 = vector.broadcast %149 : vector<1x64xf32> to vector<16x64xf32>
    %151 = arith.addf %147, %150 : vector<16x64xf32>
    %152 = arith.mulf %151, %151 : vector<16x64xf32>
    %153 = arith.mulf %151, %152 : vector<16x64xf32>
    %cst_109 = arith.constant 4.471500e-02 : f32
    %154 = vector.broadcast %cst_109 : f32 to vector<16x64xf32>
    %155 = arith.mulf %154, %153 : vector<16x64xf32>
    %156 = arith.addf %151, %155 : vector<16x64xf32>
    %cst_110 = arith.constant 0.797884583 : f32
    %157 = vector.broadcast %cst_110 : f32 to vector<16x64xf32>
    %158 = arith.mulf %157, %156 : vector<16x64xf32>
    %159 = math.tanh %158 : vector<16x64xf32>
    %cst_111 = arith.constant 1.000000e+00 : f32
    %160 = vector.broadcast %cst_111 : f32 to vector<16x64xf32>
    %161 = arith.addf %160, %159 : vector<16x64xf32>
    %cst_112 = arith.constant 5.000000e-01 : f32
    %162 = vector.broadcast %cst_112 : f32 to vector<16x64xf32>
    %163 = arith.mulf %162, %161 : vector<16x64xf32>
    %164 = arith.mulf %151, %163 : vector<16x64xf32>
    %c0_113 = arith.constant 0 : index
    %c0_114 = arith.constant 0 : index
    %c0_115 = arith.constant 0 : index
    %165 = vector.load %arg16[%c0_113, %c0_114, %c0_115] : memref<2x64x32xf32, #tpu.memory_space<vmem>>, vector<1x64x32xf32>
    %166 = vector.shape_cast %165 : vector<1x64x32xf32> to vector<64x32xf32>
    %cst_116 = arith.constant dense<0.000000e+00> : vector<16x32xf32>
    %167 = tpu.matmul %164, %166, %cst_116 {dimension_numbers = #tpu.dot_dimension_numbers<[1], [0], [0], [1], [0, 0, 1, 1], [], []>} : vector<16x64xf32>, vector<64x32xf32>, vector<16x32xf32> -> vector<16x32xf32>
    %c0_117 = arith.constant 0 : index
    %c0_118 = arith.constant 0 : index
    %c0_119 = arith.constant 0 : index
    %168 = vector.load %arg17[%c0_117, %c0_118, %c0_119] : memref<2x1x32xf32, #tpu.memory_space<vmem>>, vector<1x1x32xf32>
    %169 = vector.shape_cast %168 : vector<1x1x32xf32> to vector<1x32xf32>
    %170 = vector.broadcast %169 : vector<1x32xf32> to vector<16x32xf32>
    %171 = arith.addf %167, %170 : vector<16x32xf32>
    %172 = arith.addf %171, %144 : vector<16x32xf32>
    %c0_120 = arith.constant 0 : index
    %c0_121 = arith.constant 0 : index
    %c0_122 = arith.constant 0 : index
    %173 = vector.load %arg18[%c0_120, %c0_121, %c0_122] : memref<2x1x32xf32, #tpu.memory_space<vmem>>, vector<1x1x32xf32>
    %174 = vector.shape_cast %173 : vector<1x1x32xf32> to vector<1x32xf32>
    %c0_123 = arith.constant 0 : index
    %c0_124 = arith.constant 0 : index
    %c0_125 = arith.constant 0 : index
    %175 = vector.load %arg19[%c0_123, %c0_124, %c0_125] : memref<2x1x32xf32, #tpu.memory_space<vmem>>, vector<1x1x32xf32>
    %176 = vector.shape_cast %175 : vector<1x1x32xf32> to vector<1x32xf32>
    %cst_126 = arith.constant dense<0.000000e+00> : vector<16xf32>
    %177 = vector.multi_reduction <add>, %172, %cst_126 [1] : vector<16x32xf32> to vector<16xf32>
    %178 = vector.shape_cast %177 : vector<16xf32> to vector<16x1xf32>
    %cst_127 = arith.constant 3.200000e+01 : f32
    %179 = vector.broadcast %cst_127 : f32 to vector<16x1xf32>
    %180 = arith.divf %178, %179 : vector<16x1xf32>
    %181 = vector.broadcast %180 : vector<16x1xf32> to vector<16x32xf32>
    %182 = arith.subf %172, %181 : vector<16x32xf32>
    %183 = arith.mulf %182, %182 : vector<16x32xf32>
    %cst_128 = arith.constant dense<0.000000e+00> : vector<16xf32>
    %184 = vector.multi_reduction <add>, %183, %cst_128 [1] : vector<16x32xf32> to vector<16xf32>
    %185 = vector.shape_cast %184 : vector<16xf32> to vector<16x1xf32>
    %cst_129 = arith.constant 3.200000e+01 : f32
    %186 = vector.broadcast %cst_129 : f32 to vector<16x1xf32>
    %187 = arith.divf %185, %186 : vector<16x1xf32>
    %188 = vector.broadcast %180 : vector<16x1xf32> to vector<16x32xf32>
    %189 = arith.subf %172, %188 : vector<16x32xf32>
    %cst_130 = arith.constant 9.99999996E-13 : f32
    %190 = vector.broadcast %cst_130 : f32 to vector<16x1xf32>
    %191 = arith.addf %187, %190 : vector<16x1xf32>
    %192 = math.rsqrt %191 : vector<16x1xf32>
    %193 = vector.broadcast %192 : vector<16x1xf32> to vector<16x32xf32>
    %194 = arith.mulf %189, %193 : vector<16x32xf32>
    %195 = vector.broadcast %174 : vector<1x32xf32> to vector<16x32xf32>
    %196 = arith.mulf %194, %195 : vector<16x32xf32>
    %197 = vector.broadcast %176 : vector<1x32xf32> to vector<16x32xf32>
    %198 = arith.addf %196, %197 : vector<16x32xf32>
    %c1_131 = arith.constant 1 : index
    %c0_132 = arith.constant 0 : index
    %c0_133 = arith.constant 0 : index
    %199 = vector.load %arg24[%c1_131, %c0_132, %c0_133] : memref<3x16x32xf32, #tpu.memory_space<vmem>>, vector<1x16x32xf32>
    %200 = vector.shape_cast %199 : vector<1x16x32xf32> to vector<16x32xf32>
    %201 = vector.shape_cast %198 : vector<16x32xf32> to vector<1x16x32xf32>
    tpu.vector_store %arg24[%c1_131, %c0_132, %c0_133], %201 {strides = array<i32>} : memref<3x16x32xf32, #tpu.memory_space<vmem>>, vector<1x16x32xf32>,
    %cst_134 = arith.constant 0.000000e+00 : f32
    %202 = vector.broadcast %cst_134 : f32 to vector<16x32xf32>
    %c1_135 = arith.constant 1 : index
    %c0_136 = arith.constant 0 : index
    %c0_137 = arith.constant 0 : index
    %c0_138 = arith.constant 0 : index
    %203 = vector.load %arg4[%c1_135, %c0_136, %c0_137, %c0_138] : memref<2x2x32x16xf32, #tpu.memory_space<vmem>>, vector<1x1x32x16xf32>
    %204 = vector.shape_cast %203 : vector<1x1x32x16xf32> to vector<32x16xf32>
    %cst_139 = arith.constant dense<0.000000e+00> : vector<16x16xf32>
    %205 = tpu.matmul %198, %204, %cst_139 {dimension_numbers = #tpu.dot_dimension_numbers<[1], [0], [0], [1], [0, 0, 1, 1], [], []>} : vector<16x32xf32>, vector<32x16xf32>, vector<16x16xf32> -> vector<16x16xf32>
    %c1_140 = arith.constant 1 : index
    %c0_141 = arith.constant 0 : index
    %c0_142 = arith.constant 0 : index
    %c0_143 = arith.constant 0 : index
    %206 = vector.load %arg5[%c1_140, %c0_141, %c0_142, %c0_143] : memref<2x2x1x16xf32, #tpu.memory_space<vmem>>, vector<1x1x1x16xf32>
    %207 = vector.shape_cast %206 : vector<1x1x1x16xf32> to vector<1x16xf32>
    %208 = vector.broadcast %207 : vector<1x16xf32> to vector<16x16xf32>
    %209 = arith.addf %205, %208 : vector<16x16xf32>
    %c1_144 = arith.constant 1 : index
    %c0_145 = arith.constant 0 : index
    %c0_146 = arith.constant 0 : index
    %c0_147 = arith.constant 0 : index
    %210 = vector.load %arg6[%c1_144, %c0_145, %c0_146, %c0_147] : memref<2x2x32x16xf32, #tpu.memory_space<vmem>>, vector<1x1x32x16xf32>
    %211 = vector.shape_cast %210 : vector<1x1x32x16xf32> to vector<32x16xf32>
    %cst_148 = arith.constant dense<0.000000e+00> : vector<16x16xf32>
    %212 = tpu.matmul %198, %211, %cst_148 {dimension_numbers = #tpu.dot_dimension_numbers<[1], [0], [0], [1], [0, 0, 1, 1], [], []>} : vector<16x32xf32>, vector<32x16xf32>, vector<16x16xf32> -> vector<16x16xf32>
    %c1_149 = arith.constant 1 : index
    %c0_150 = arith.constant 0 : index
    %c0_151 = arith.constant 0 : index
    %c0_152 = arith.constant 0 : index
    %213 = vector.load %arg7[%c1_149, %c0_150, %c0_151, %c0_152] : memref<2x2x1x16xf32, #tpu.memory_space<vmem>>, vector<1x1x1x16xf32>
    %214 = vector.shape_cast %213 : vector<1x1x1x16xf32> to vector<1x16xf32>
    %215 = vector.broadcast %214 : vector<1x16xf32> to vector<16x16xf32>
    %216 = arith.addf %212, %215 : vector<16x16xf32>
    %c1_153 = arith.constant 1 : index
    %c0_154 = arith.constant 0 : index
    %c0_155 = arith.constant 0 : index
    %c0_156 = arith.constant 0 : index
    %217 = vector.load %arg8[%c1_153, %c0_154, %c0_155, %c0_156] : memref<2x2x32x16xf32, #tpu.memory_space<vmem>>, vector<1x1x32x16xf32>
    %218 = vector.shape_cast %217 : vector<1x1x32x16xf32> to vector<32x16xf32>
    %cst_157 = arith.constant dense<0.000000e+00> : vector<16x16xf32>
    %219 = tpu.matmul %198, %218, %cst_157 {dimension_numbers = #tpu.dot_dimension_numbers<[1], [0], [0], [1], [0, 0, 1, 1], [], []>} : vector<16x32xf32>, vector<32x16xf32>, vector<16x16xf32> -> vector<16x16xf32>
    %c1_158 = arith.constant 1 : index
    %c0_159 = arith.constant 0 : index
    %c0_160 = arith.constant 0 : index
    %c0_161 = arith.constant 0 : index
    %220 = vector.load %arg9[%c1_158, %c0_159, %c0_160, %c0_161] : memref<2x2x1x16xf32, #tpu.memory_space<vmem>>, vector<1x1x1x16xf32>
    %221 = vector.shape_cast %220 : vector<1x1x1x16xf32> to vector<1x16xf32>
    %222 = vector.broadcast %221 : vector<1x16xf32> to vector<16x16xf32>
    %223 = arith.addf %219, %222 : vector<16x16xf32>
    %224 = tpu.transpose %216, [1, 0] : vector<16x16xf32> -> vector<16x16xf32>
    %cst_162 = arith.constant dense<0.000000e+00> : vector<16x16xf32>
    %225 = tpu.matmul %209, %224, %cst_162 {dimension_numbers = #tpu.dot_dimension_numbers<[1], [0], [0], [1], [0, 0, 1, 1], [], []>} : vector<16x16xf32>, vector<16x16xf32>, vector<16x16xf32> -> vector<16x16xf32>
    %226 = vector.broadcast %2 : f32 to vector<16x16xf32>
    %227 = arith.mulf %225, %226 : vector<16x16xf32>
    %228 = arith.addf %227, %0 : vector<16x16xf32>
    %cst_163 = arith.constant dense<0xFF800000> : vector<16xf32>
    %229 = vector.multi_reduction <maximumf>, %228, %cst_163 [1] : vector<16x16xf32> to vector<16xf32>
    %230 = vector.shape_cast %229 : vector<16xf32> to vector<16x1xf32>
    %231 = vector.broadcast %230 : vector<16x1xf32> to vector<16x16xf32>
    %232 = arith.subf %228, %231 : vector<16x16xf32>
    %233 = math.exp %232 : vector<16x16xf32>
    %cst_164 = arith.constant dense<0.000000e+00> : vector<16xf32>
    %234 = vector.multi_reduction <add>, %233, %cst_164 [1] : vector<16x16xf32> to vector<16xf32>
    %235 = vector.shape_cast %234 : vector<16xf32> to vector<16x1xf32>
    %236 = tpu.reciprocal %235 {approx = true} : vector<16x1xf32> -> vector<16x1xf32>
    %237 = vector.broadcast %236 : vector<16x1xf32> to vector<16x16xf32>
    %238 = arith.mulf %233, %237 : vector<16x16xf32>
    %cst_165 = arith.constant dense<0.000000e+00> : vector<16x16xf32>
    %239 = tpu.matmul %238, %223, %cst_165 {dimension_numbers = #tpu.dot_dimension_numbers<[1], [0], [0], [1], [0, 0, 1, 1], [], []>} : vector<16x16xf32>, vector<16x16xf32>, vector<16x16xf32> -> vector<16x16xf32>
    %c1_166 = arith.constant 1 : index
    %c0_167 = arith.constant 0 : index
    %c0_168 = arith.constant 0 : index
    %c0_169 = arith.constant 0 : index
    %240 = vector.load %arg10[%c1_166, %c0_167, %c0_168, %c0_169] : memref<2x2x16x32xf32, #tpu.memory_space<vmem>>, vector<1x1x16x32xf32>
    %241 = vector.shape_cast %240 : vector<1x1x16x32xf32> to vector<16x32xf32>
    %cst_170 = arith.constant dense<0.000000e+00> : vector<16x32xf32>
    %242 = tpu.matmul %239, %241, %cst_170 {dimension_numbers = #tpu.dot_dimension_numbers<[1], [0], [0], [1], [0, 0, 1, 1], [], []>} : vector<16x16xf32>, vector<16x32xf32>, vector<16x32xf32> -> vector<16x32xf32>
    %243 = arith.addf %202, %242 : vector<16x32xf32>
    %c1_171 = arith.constant 1 : index
    %c1_172 = arith.constant 1 : index
    %c0_173 = arith.constant 0 : index
    %c0_174 = arith.constant 0 : index
    %244 = vector.load %arg4[%c1_171, %c1_172, %c0_173, %c0_174] : memref<2x2x32x16xf32, #tpu.memory_space<vmem>>, vector<1x1x32x16xf32>
    %245 = vector.shape_cast %244 : vector<1x1x32x16xf32> to vector<32x16xf32>
    %cst_175 = arith.constant dense<0.000000e+00> : vector<16x16xf32>
    %246 = tpu.matmul %198, %245, %cst_175 {dimension_numbers = #tpu.dot_dimension_numbers<[1], [0], [0], [1], [0, 0, 1, 1], [], []>} : vector<16x32xf32>, vector<32x16xf32>, vector<16x16xf32> -> vector<16x16xf32>
    %c1_176 = arith.constant 1 : index
    %c1_177 = arith.constant 1 : index
    %c0_178 = arith.constant 0 : index
    %c0_179 = arith.constant 0 : index
    %247 = vector.load %arg5[%c1_176, %c1_177, %c0_178, %c0_179] : memref<2x2x1x16xf32, #tpu.memory_space<vmem>>, vector<1x1x1x16xf32>
    %248 = vector.shape_cast %247 : vector<1x1x1x16xf32> to vector<1x16xf32>
    %249 = vector.broadcast %248 : vector<1x16xf32> to vector<16x16xf32>
    %250 = arith.addf %246, %249 : vector<16x16xf32>
    %c1_180 = arith.constant 1 : index
    %c1_181 = arith.constant 1 : index
    %c0_182 = arith.constant 0 : index
    %c0_183 = arith.constant 0 : index
    %251 = vector.load %arg6[%c1_180, %c1_181, %c0_182, %c0_183] : memref<2x2x32x16xf32, #tpu.memory_space<vmem>>, vector<1x1x32x16xf32>
    %252 = vector.shape_cast %251 : vector<1x1x32x16xf32> to vector<32x16xf32>
    %cst_184 = arith.constant dense<0.000000e+00> : vector<16x16xf32>
    %253 = tpu.matmul %198, %252, %cst_184 {dimension_numbers = #tpu.dot_dimension_numbers<[1], [0], [0], [1], [0, 0, 1, 1], [], []>} : vector<16x32xf32>, vector<32x16xf32>, vector<16x16xf32> -> vector<16x16xf32>
    %c1_185 = arith.constant 1 : index
    %c1_186 = arith.constant 1 : index
    %c0_187 = arith.constant 0 : index
    %c0_188 = arith.constant 0 : index
    %254 = vector.load %arg7[%c1_185, %c1_186, %c0_187, %c0_188] : memref<2x2x1x16xf32, #tpu.memory_space<vmem>>, vector<1x1x1x16xf32>
    %255 = vector.shape_cast %254 : vector<1x1x1x16xf32> to vector<1x16xf32>
    %256 = vector.broadcast %255 : vector<1x16xf32> to vector<16x16xf32>
    %257 = arith.addf %253, %256 : vector<16x16xf32>
    %c1_189 = arith.constant 1 : index
    %c1_190 = arith.constant 1 : index
    %c0_191 = arith.constant 0 : index
    %c0_192 = arith.constant 0 : index
    %258 = vector.load %arg8[%c1_189, %c1_190, %c0_191, %c0_192] : memref<2x2x32x16xf32, #tpu.memory_space<vmem>>, vector<1x1x32x16xf32>
    %259 = vector.shape_cast %258 : vector<1x1x32x16xf32> to vector<32x16xf32>
    %cst_193 = arith.constant dense<0.000000e+00> : vector<16x16xf32>
    %260 = tpu.matmul %198, %259, %cst_193 {dimension_numbers = #tpu.dot_dimension_numbers<[1], [0], [0], [1], [0, 0, 1, 1], [], []>} : vector<16x32xf32>, vector<32x16xf32>, vector<16x16xf32> -> vector<16x16xf32>
    %c1_194 = arith.constant 1 : index
    %c1_195 = arith.constant 1 : index
    %c0_196 = arith.constant 0 : index
    %c0_197 = arith.constant 0 : index
    %261 = vector.load %arg9[%c1_194, %c1_195, %c0_196, %c0_197] : memref<2x2x1x16xf32, #tpu.memory_space<vmem>>, vector<1x1x1x16xf32>
    %262 = vector.shape_cast %261 : vector<1x1x1x16xf32> to vector<1x16xf32>
    %263 = vector.broadcast %262 : vector<1x16xf32> to vector<16x16xf32>
    %264 = arith.addf %260, %263 : vector<16x16xf32>
    %265 = tpu.transpose %257, [1, 0] : vector<16x16xf32> -> vector<16x16xf32>
    %cst_198 = arith.constant dense<0.000000e+00> : vector<16x16xf32>
    %266 = tpu.matmul %250, %265, %cst_198 {dimension_numbers = #tpu.dot_dimension_numbers<[1], [0], [0], [1], [0, 0, 1, 1], [], []>} : vector<16x16xf32>, vector<16x16xf32>, vector<16x16xf32> -> vector<16x16xf32>
    %267 = vector.broadcast %2 : f32 to vector<16x16xf32>
    %268 = arith.mulf %266, %267 : vector<16x16xf32>
    %269 = arith.addf %268, %0 : vector<16x16xf32>
    %cst_199 = arith.constant dense<0xFF800000> : vector<16xf32>
    %270 = vector.multi_reduction <maximumf>, %269, %cst_199 [1] : vector<16x16xf32> to vector<16xf32>
    %271 = vector.shape_cast %270 : vector<16xf32> to vector<16x1xf32>
    %272 = vector.broadcast %271 : vector<16x1xf32> to vector<16x16xf32>
    %273 = arith.subf %269, %272 : vector<16x16xf32>
    %274 = math.exp %273 : vector<16x16xf32>
    %cst_200 = arith.constant dense<0.000000e+00> : vector<16xf32>
    %275 = vector.multi_reduction <add>, %274, %cst_200 [1] : vector<16x16xf32> to vector<16xf32>
    %276 = vector.shape_cast %275 : vector<16xf32> to vector<16x1xf32>
    %277 = tpu.reciprocal %276 {approx = true} : vector<16x1xf32> -> vector<16x1xf32>
    %278 = vector.broadcast %277 : vector<16x1xf32> to vector<16x16xf32>
    %279 = arith.mulf %274, %278 : vector<16x16xf32>
    %cst_201 = arith.constant dense<0.000000e+00> : vector<16x16xf32>
    %280 = tpu.matmul %279, %264, %cst_201 {dimension_numbers = #tpu.dot_dimension_numbers<[1], [0], [0], [1], [0, 0, 1, 1], [], []>} : vector<16x16xf32>, vector<16x16xf32>, vector<16x16xf32> -> vector<16x16xf32>
    %c1_202 = arith.constant 1 : index
    %c1_203 = arith.constant 1 : index
    %c0_204 = arith.constant 0 : index
    %c0_205 = arith.constant 0 : index
    %281 = vector.load %arg10[%c1_202, %c1_203, %c0_204, %c0_205] : memref<2x2x16x32xf32, #tpu.memory_space<vmem>>, vector<1x1x16x32xf32>
    %282 = vector.shape_cast %281 : vector<1x1x16x32xf32> to vector<16x32xf32>
    %cst_206 = arith.constant dense<0.000000e+00> : vector<16x32xf32>
    %283 = tpu.matmul %280, %282, %cst_206 {dimension_numbers = #tpu.dot_dimension_numbers<[1], [0], [0], [1], [0, 0, 1, 1], [], []>} : vector<16x16xf32>, vector<16x32xf32>, vector<16x32xf32> -> vector<16x32xf32>
    %284 = arith.addf %243, %283 : vector<16x32xf32>
    %c1_207 = arith.constant 1 : index
    %c0_208 = arith.constant 0 : index
    %c0_209 = arith.constant 0 : index
    %285 = vector.load %arg11[%c1_207, %c0_208, %c0_209] : memref<2x1x32xf32, #tpu.memory_space<vmem>>, vector<1x1x32xf32>
    %286 = vector.shape_cast %285 : vector<1x1x32xf32> to vector<1x32xf32>
    %287 = vector.broadcast %286 : vector<1x32xf32> to vector<16x32xf32>
    %288 = arith.addf %284, %287 : vector<16x32xf32>
    %289 = arith.addf %288, %198 : vector<16x32xf32>
    %c1_210 = arith.constant 1 : index
    %c0_211 = arith.constant 0 : index
    %c0_212 = arith.constant 0 : index
    %290 = vector.load %arg12[%c1_210, %c0_211, %c0_212] : memref<2x1x32xf32, #tpu.memory_space<vmem>>, vector<1x1x32xf32>
    %291 = vector.shape_cast %290 : vector<1x1x32xf32> to vector<1x32xf32>
    %c1_213 = arith.constant 1 : index
    %c0_214 = arith.constant 0 : index
    %c0_215 = arith.constant 0 : index
    %292 = vector.load %arg13[%c1_213, %c0_214, %c0_215] : memref<2x1x32xf32, #tpu.memory_space<vmem>>, vector<1x1x32xf32>
    %293 = vector.shape_cast %292 : vector<1x1x32xf32> to vector<1x32xf32>
    %cst_216 = arith.constant dense<0.000000e+00> : vector<16xf32>
    %294 = vector.multi_reduction <add>, %289, %cst_216 [1] : vector<16x32xf32> to vector<16xf32>
    %295 = vector.shape_cast %294 : vector<16xf32> to vector<16x1xf32>
    %cst_217 = arith.constant 3.200000e+01 : f32
    %296 = vector.broadcast %cst_217 : f32 to vector<16x1xf32>
    %297 = arith.divf %295, %296 : vector<16x1xf32>
    %298 = vector.broadcast %297 : vector<16x1xf32> to vector<16x32xf32>
    %299 = arith.subf %289, %298 : vector<16x32xf32>
    %300 = arith.mulf %299, %299 : vector<16x32xf32>
    %cst_218 = arith.constant dense<0.000000e+00> : vector<16xf32>
    %301 = vector.multi_reduction <add>, %300, %cst_218 [1] : vector<16x32xf32> to vector<16xf32>
    %302 = vector.shape_cast %301 : vector<16xf32> to vector<16x1xf32>
    %cst_219 = arith.constant 3.200000e+01 : f32
    %303 = vector.broadcast %cst_219 : f32 to vector<16x1xf32>
    %304 = arith.divf %302, %303 : vector<16x1xf32>
    %305 = vector.broadcast %297 : vector<16x1xf32> to vector<16x32xf32>
    %306 = arith.subf %289, %305 : vector<16x32xf32>
    %cst_220 = arith.constant 9.99999996E-13 : f32
    %307 = vector.broadcast %cst_220 : f32 to vector<16x1xf32>
    %308 = arith.addf %304, %307 : vector<16x1xf32>
    %309 = math.rsqrt %308 : vector<16x1xf32>
    %310 = vector.broadcast %309 : vector<16x1xf32> to vector<16x32xf32>
    %311 = arith.mulf %306, %310 : vector<16x32xf32>
    %312 = vector.broadcast %291 : vector<1x32xf32> to vector<16x32xf32>
    %313 = arith.mulf %311, %312 : vector<16x32xf32>
    %314 = vector.broadcast %293 : vector<1x32xf32> to vector<16x32xf32>
    %315 = arith.addf %313, %314 : vector<16x32xf32>
    %c1_221 = arith.constant 1 : index
    %c0_222 = arith.constant 0 : index
    %c0_223 = arith.constant 0 : index
    %316 = vector.load %arg14[%c1_221, %c0_222, %c0_223] : memref<2x32x64xf32, #tpu.memory_space<vmem>>, vector<1x32x64xf32>
    %317 = vector.shape_cast %316 : vector<1x32x64xf32> to vector<32x64xf32>
    %cst_224 = arith.constant dense<0.000000e+00> : vector<16x64xf32>
    %318 = tpu.matmul %315, %317, %cst_224 {dimension_numbers = #tpu.dot_dimension_numbers<[1], [0], [0], [1], [0, 0, 1, 1], [], []>} : vector<16x32xf32>, vector<32x64xf32>, vector<16x64xf32> -> vector<16x64xf32>
    %c1_225 = arith.constant 1 : index
    %c0_226 = arith.constant 0 : index
    %c0_227 = arith.constant 0 : index
    %319 = vector.load %arg15[%c1_225, %c0_226, %c0_227] : memref<2x1x64xf32, #tpu.memory_space<vmem>>, vector<1x1x64xf32>
    %320 = vector.shape_cast %319 : vector<1x1x64xf32> to vector<1x64xf32>
    %321 = vector.broadcast %320 : vector<1x64xf32> to vector<16x64xf32>
    %322 = arith.addf %318, %321 : vector<16x64xf32>
    %323 = arith.mulf %322, %322 : vector<16x64xf32>
    %324 = arith.mulf %322, %323 : vector<16x64xf32>
    %cst_228 = arith.constant 4.471500e-02 : f32
    %325 = vector.broadcast %cst_228 : f32 to vector<16x64xf32>
    %326 = arith.mulf %325, %324 : vector<16x64xf32>
    %327 = arith.addf %322, %326 : vector<16x64xf32>
    %cst_229 = arith.constant 0.797884583 : f32
    %328 = vector.broadcast %cst_229 : f32 to vector<16x64xf32>
    %329 = arith.mulf %328, %327 : vector<16x64xf32>
    %330 = math.tanh %329 : vector<16x64xf32>
    %cst_230 = arith.constant 1.000000e+00 : f32
    %331 = vector.broadcast %cst_230 : f32 to vector<16x64xf32>
    %332 = arith.addf %331, %330 : vector<16x64xf32>
    %cst_231 = arith.constant 5.000000e-01 : f32
    %333 = vector.broadcast %cst_231 : f32 to vector<16x64xf32>
    %334 = arith.mulf %333, %332 : vector<16x64xf32>
    %335 = arith.mulf %322, %334 : vector<16x64xf32>
    %c1_232 = arith.constant 1 : index
    %c0_233 = arith.constant 0 : index
    %c0_234 = arith.constant 0 : index
    %336 = vector.load %arg16[%c1_232, %c0_233, %c0_234] : memref<2x64x32xf32, #tpu.memory_space<vmem>>, vector<1x64x32xf32>
    %337 = vector.shape_cast %336 : vector<1x64x32xf32> to vector<64x32xf32>
    %cst_235 = arith.constant dense<0.000000e+00> : vector<16x32xf32>
    %338 = tpu.matmul %335, %337, %cst_235 {dimension_numbers = #tpu.dot_dimension_numbers<[1], [0], [0], [1], [0, 0, 1, 1], [], []>} : vector<16x64xf32>, vector<64x32xf32>, vector<16x32xf32> -> vector<16x32xf32>
    %c1_236 = arith.constant 1 : index
    %c0_237 = arith.constant 0 : index
    %c0_238 = arith.constant 0 : index
    %339 = vector.load %arg17[%c1_236, %c0_237, %c0_238] : memref<2x1x32xf32, #tpu.memory_space<vmem>>, vector<1x1x32xf32>
    %340 = vector.shape_cast %339 : vector<1x1x32xf32> to vector<1x32xf32>
    %341 = vector.broadcast %340 : vector<1x32xf32> to vector<16x32xf32>
    %342 = arith.addf %338, %341 : vector<16x32xf32>
    %343 = arith.addf %342, %315 : vector<16x32xf32>
    %c1_239 = arith.constant 1 : index
    %c0_240 = arith.constant 0 : index
    %c0_241 = arith.constant 0 : index
    %344 = vector.load %arg18[%c1_239, %c0_240, %c0_241] : memref<2x1x32xf32, #tpu.memory_space<vmem>>, vector<1x1x32xf32>
    %345 = vector.shape_cast %344 : vector<1x1x32xf32> to vector<1x32xf32>
    %c1_242 = arith.constant 1 : index
    %c0_243 = arith.constant 0 : index
    %c0_244 = arith.constant 0 : index
    %346 = vector.load %arg19[%c1_242, %c0_243, %c0_244] : memref<2x1x32xf32, #tpu.memory_space<vmem>>, vector<1x1x32xf32>
    %347 = vector.shape_cast %346 : vector<1x1x32xf32> to vector<1x32xf32>
    %cst_245 = arith.constant dense<0.000000e+00> : vector<16xf32>
    %348 = vector.multi_reduction <add>, %343, %cst_245 [1] : vector<16x32xf32> to vector<16xf32>
    %349 = vector.shape_cast %348 : vector<16xf32> to vector<16x1xf32>
    %cst_246 = arith.constant 3.200000e+01 : f32
    %350 = vector.broadcast %cst_246 : f32 to vector<16x1xf32>
    %351 = arith.divf %349, %350 : vector<16x1xf32>
    %352 = vector.broadcast %351 : vector<16x1xf32> to vector<16x32xf32>
    %353 = arith.subf %343, %352 : vector<16x32xf32>
    %354 = arith.mulf %353, %353 : vector<16x32xf32>
    %cst_247 = arith.constant dense<0.000000e+00> : vector<16xf32>
    %355 = vector.multi_reduction <add>, %354, %cst_247 [1] : vector<16x32xf32> to vector<16xf32>
    %356 = vector.shape_cast %355 : vector<16xf32> to vector<16x1xf32>
    %cst_248 = arith.constant 3.200000e+01 : f32
    %357 = vector.broadcast %cst_248 : f32 to vector<16x1xf32>
    %358 = arith.divf %356, %357 : vector<16x1xf32>
    %359 = vector.broadcast %351 : vector<16x1xf32> to vector<16x32xf32>
    %360 = arith.subf %343, %359 : vector<16x32xf32>
    %cst_249 = arith.constant 9.99999996E-13 : f32
    %361 = vector.broadcast %cst_249 : f32 to vector<16x1xf32>
    %362 = arith.addf %358, %361 : vector<16x1xf32>
    %363 = math.rsqrt %362 : vector<16x1xf32>
    %364 = vector.broadcast %363 : vector<16x1xf32> to vector<16x32xf32>
    %365 = arith.mulf %360, %364 : vector<16x32xf32>
    %366 = vector.broadcast %345 : vector<1x32xf32> to vector<16x32xf32>
    %367 = arith.mulf %365, %366 : vector<16x32xf32>
    %368 = vector.broadcast %347 : vector<1x32xf32> to vector<16x32xf32>
    %369 = arith.addf %367, %368 : vector<16x32xf32>
    %c2 = arith.constant 2 : index
    %c0_250 = arith.constant 0 : index
    %c0_251 = arith.constant 0 : index
    %370 = vector.load %arg24[%c2, %c0_250, %c0_251] : memref<3x16x32xf32, #tpu.memory_space<vmem>>, vector<1x16x32xf32>
    %371 = vector.shape_cast %370 : vector<1x16x32xf32> to vector<16x32xf32>
    %372 = vector.shape_cast %369 : vector<16x32xf32> to vector<1x16x32xf32>
    tpu.vector_store %arg24[%c2, %c0_250, %c0_251], %372 {strides = array<i32>} : memref<3x16x32xf32, #tpu.memory_space<vmem>>, vector<1x16x32xf32>,
    %373 = tpu.iota {dimensions = array<i32: 0>} : vector<2x16xi32>
    %374 = tpu.iota {dimensions = array<i32: 1>} : vector<2x16xi32>
    %c8_i32 = arith.constant 8 : i32
    %375 = vector.broadcast %c8_i32 : i32 to vector<2x16xi32>
    %376 = arith.muli %373, %375 : vector<2x16xi32>
    %377 = arith.cmpi eq, %374, %376 : vector<2x16xi32>
    %378 = arith.extui %377 : vector<2x16xi1> to vector<2x16xi32>
    %379 = arith.sitofp %378 : vector<2x16xi32> to vector<2x16xf32>
    %cst_252 = arith.constant dense<0.000000e+00> : vector<2x32xf32>
    %380 = tpu.matmul %379, %369, %cst_252 {dimension_numbers = #tpu.dot_dimension_numbers<[1], [0], [0], [1], [0, 0, 1, 1], [], []>} : vector<2x16xf32>, vector<16x32xf32>, vector<2x32xf32> -> vector<2x32xf32>
    %c0_253 = arith.constant 0 : index
    %c0_254 = arith.constant 0 : index
    %381 = vector.load %arg20[%c0_253, %c0_254] : memref<32x32xf32, #tpu.memory_space<vmem>>, vector<32x32xf32>
    %cst_255 = arith.constant dense<0.000000e+00> : vector<2x32xf32>
    %382 = tpu.matmul %380, %381, %cst_255 {dimension_numbers = #tpu.dot_dimension_numbers<[1], [0], [0], [1], [0, 0, 1, 1], [], []>} : vector<2x32xf32>, vector<32x32xf32>, vector<2x32xf32> -> vector<2x32xf32>
    %c0_256 = arith.constant 0 : index
    %c0_257 = arith.constant 0 : index
    %383 = vector.load %arg21[%c0_256, %c0_257] : memref<1x32xf32, #tpu.memory_space<vmem>>, vector<1x32xf32>
    %384 = vector.broadcast %383 : vector<1x32xf32> to vector<2x32xf32>
    %385 = arith.addf %382, %384 : vector<2x32xf32>
    %386 = math.tanh %385 : vector<2x32xf32>
    %c0_258 = arith.constant 0 : index
    %c0_259 = arith.constant 0 : index
    %387 = vector.load %arg22[%c0_258, %c0_259] : memref<32x3xf32, #tpu.memory_space<vmem>>, vector<32x3xf32>
    %cst_260 = arith.constant dense<0.000000e+00> : vector<2x3xf32>
    %388 = tpu.matmul %386, %387, %cst_260 {dimension_numbers = #tpu.dot_dimension_numbers<[1], [0], [0], [1], [0, 0, 1, 1], [], []>} : vector<2x32xf32>, vector<32x3xf32>, vector<2x3xf32> -> vector<2x3xf32>
    %c0_261 = arith.constant 0 : index
    %c0_262 = arith.constant 0 : index
    %389 = vector.load %arg23[%c0_261, %c0_262] : memref<1x3xf32, #tpu.memory_space<vmem>>, vector<1x3xf32>
    %390 = vector.broadcast %389 : vector<1x3xf32> to vector<2x3xf32>
    %391 = arith.addf %388, %390 : vector<2x3xf32>
    %c0_263 = arith.constant 0 : index
    %c0_264 = arith.constant 0 : index
    %392 = vector.load %arg25[%c0_263, %c0_264] : memref<2x3xf32, #tpu.memory_space<vmem>>, vector<2x3xf32>
    tpu.vector_store %arg25[%c0_263, %c0_264], %391 {strides = array<i32>} : memref<2x3xf32, #tpu.memory_space<vmem>>, vector<2x3xf32>,
    return
  }
}

</mosaic_0001>

<llo_original>
// kernel: teacher_forward.1
$region0: #{teacher_forward.1}
  #allocation0 [shape = 'u32[]', space=smem, size = 0x4, offset = 0x4, fixed_abs, tag = 'smem constant byte address 0x4 - core index']
  #allocation1 [shape = 'u32[72,128]{1,0:T(1,128)}', space=vmem, size = 0x9000, scoped, tag = 'internal scratch']
  %s0 = inlined_call_operand.vmem [shape: f32[16,32], index: 0, kind: input, shape index: {}]
  %s1 = inlined_call_operand.vmem [shape: f32[16,16], index: 1, kind: input, shape index: {}]
  %s2 = inlined_call_operand.vmem [shape: f32[1,32], index: 2, kind: input, shape index: {}]
  %s3 = inlined_call_operand.vmem [shape: f32[1,32], index: 3, kind: input, shape index: {}]
  %s4 = inlined_call_operand.vmem [shape: f32[2,2,32,16], index: 4, kind: input, shape index: {}]
  %s5 = inlined_call_operand.vmem [shape: f32[2,2,1,16], index: 5, kind: input, shape index: {}]
  %s6 = inlined_call_operand.vmem [shape: f32[2,2,32,16], index: 6, kind: input, shape index: {}]
  %s7 = inlined_call_operand.vmem [shape: f32[2,2,1,16], index: 7, kind: input, shape index: {}]
  %s8 = inlined_call_operand.vmem [shape: f32[2,2,32,16], index: 8, kind: input, shape index: {}]
  %s9 = inlined_call_operand.vmem [shape: f32[2,2,1,16], index: 9, kind: input, shape index: {}]
  %s10 = inlined_call_operand.vmem [shape: f32[2,2,16,32], index: 10, kind: input, shape index: {}]
  %s11 = inlined_call_operand.vmem [shape: f32[2,1,32], index: 11, kind: input, shape index: {}]
  %s12 = inlined_call_operand.vmem [shape: f32[2,1,32], index: 12, kind: input, shape index: {}]
  %s13 = inlined_call_operand.vmem [shape: f32[2,1,32], index: 13, kind: input, shape index: {}]
  %s14 = inlined_call_operand.vmem [shape: f32[2,32,64], index: 14, kind: input, shape index: {}]
  %s15 = inlined_call_operand.vmem [shape: f32[2,1,64], index: 15, kind: input, shape index: {}]
  %s16 = inlined_call_operand.vmem [shape: f32[2,64,32], index: 16, kind: input, shape index: {}]
  %s17 = inlined_call_operand.vmem [shape: f32[2,1,32], index: 17, kind: input, shape index: {}]
  %s18 = inlined_call_operand.vmem [shape: f32[2,1,32], index: 18, kind: input, shape index: {}]
  %s19 = inlined_call_operand.vmem [shape: f32[2,1,32], index: 19, kind: input, shape index: {}]
  %s20 = inlined_call_operand.vmem [shape: f32[32,32], index: 20, kind: input, shape index: {}]
  %s21 = inlined_call_operand.vmem [shape: f32[1,32], index: 21, kind: input, shape index: {}]
  %s22 = inlined_call_operand.vmem [shape: f32[32,3], index: 22, kind: input, shape index: {}]
  %s23 = inlined_call_operand.vmem [shape: f32[1,3], index: 23, kind: input, shape index: {}]
  %s24 = inlined_call_operand.vmem [shape: f32[3,16,32], index: 24, kind: output, shape index: {0}]
  %s25 = inlined_call_operand.hbm [shape: f32[2,3], index: 25, kind: output, shape index: {1}]
  %26 = xla_tuple %s24, %s25
  %s27 = sld [smem:[#allocation0]]
  $region114: #{teacher_forward.1} parent=0
    _
  %s29 = ssub.s32 1, %s27
  %s30 = scalar_select 0, %s29, %s27
  $region1: #{teacher_forward.1} parent=0
    #allocation2 [shape = 'u8[1024]{0}', space=vmem, size = 0x400, scoped, tag = 'output window, operand 1, single buffered']
    #allocation3 [shape = 's32[1]{0}', space=sflag, size = 0x4, scoped, tag = 'scoped memory for teacher_forward.1']
    %31 = vsyncpa [#allocation3], 0
    // Predicated region
    $region2: #{teacher_forward.1} parent=1 // pred_check
      _
    $region3: #{teacher_forward.1} parent=1 // pred_check_branch
      %33 = sbr.rel (0) target = $region5
    $region4: #{teacher_forward.1} parent=1 // pred_region
      _
    $region5: #{teacher_forward.1} parent=1 // pred_fallthru
      _
    // Predicated region
    $region6: #{teacher_forward.1} parent=1 // pred_check
      _
    $region7: #{teacher_forward.1} parent=1 // pred_check_branch
      %35 = sbr.rel (0) target = $region9
    $region8: #{teacher_forward.1} parent=1 // pred_region
      _
    $region9: #{teacher_forward.1} parent=1 // pred_fallthru
      _
    // Predicated region
    $region10: #{teacher_forward.1} parent=1 // pred_check
      _
    $region11: #{teacher_forward.1} parent=1 // pred_check_branch
      %37 = sbr.rel (0) target = $region13
    $region12: #{teacher_forward.1} parent=1 // pred_region
      _
    $region13: #{teacher_forward.1} parent=1 // pred_fallthru
      _
    // Predicated region
    $region14: #{teacher_forward.1} parent=1 // pred_check
      _
    $region15: #{teacher_forward.1} parent=1 // pred_check_branch
      %39 = sbr.rel (0) target = $region17
    $region16: #{teacher_forward.1} parent=1 // pred_region
      _
    $region17: #{teacher_forward.1} parent=1 // pred_fallthru
      _
    // Predicated region
    $region18: #{teacher_forward.1} parent=1 // pred_check
      _
    $region19: #{teacher_forward.1} parent=1 // pred_check_branch
      %41 = sbr.rel (0) target = $region21
    $region20: #{teacher_forward.1} parent=1 // pred_region
      _
    $region21: #{teacher_forward.1} parent=1 // pred_fallthru
      _
    // Predicated region
    $region22: #{teacher_forward.1} parent=1 // pred_check
      _
    $region23: #{teacher_forward.1} parent=1 // pred_check_branch
      %43 = sbr.rel (0) target = $region25
    $region24: #{teacher_forward.1} parent=1 // pred_region
      _
    $region25: #{teacher_forward.1} parent=1 // pred_fallthru
      _
    // Predicated region
    $region26: #{teacher_forward.1} parent=1 // pred_check
      _
    $region27: #{teacher_forward.1} parent=1 // pred_check_branch
      %45 = sbr.rel (0) target = $region29
    $region28: #{teacher_forward.1} parent=1 // pred_region
      _
    $region29: #{teacher_forward.1} parent=1 // pred_fallthru
      _
    // Predicated region
    $region30: #{teacher_forward.1} parent=1 // pred_check
      _
    $region31: #{teacher_forward.1} parent=1 // pred_check_branch
      %47 = sbr.rel (0) target = $region33
    $region32: #{teacher_forward.1} parent=1 // pred_region
      _
    $region33: #{teacher_forward.1} parent=1 // pred_fallthru
      _
    // Predicated region
    $region34: #{teacher_forward.1} parent=1 // pred_check
      _
    $region35: #{teacher_forward.1} parent=1 // pred_check_branch
      %49 = sbr.rel (0) target = $region37
    $region36: #{teacher_forward.1} parent=1 // pred_region
      _
    $region37: #{teacher_forward.1} parent=1 // pred_fallthru
      _
    // Predicated region
    $region38: #{teacher_forward.1} parent=1 // pred_check
      _
    $region39: #{teacher_forward.1} parent=1 // pred_check_branch
      %51 = sbr.rel (0) target = $region41
    $region40: #{teacher_forward.1} parent=1 // pred_region
      _
    $region41: #{teacher_forward.1} parent=1 // pred_fallthru
      _
    // Predicated region
    $region42: #{teacher_forward.1} parent=1 // pred_check
      _
    $region43: #{teacher_forward.1} parent=1 // pred_check_branch
      %53 = sbr.rel (0) target = $region45
    $region44: #{teacher_forward.1} parent=1 // pred_region
      _
    $region45: #{teacher_forward.1} parent=1 // pred_fallthru
      _
    // Predicated region
    $region46: #{teacher_forward.1} parent=1 // pred_check
      _
    $region47: #{teacher_forward.1} parent=1 // pred_check_branch
      %55 = sbr.rel (0) target = $region49
    $region48: #{teacher_forward.1} parent=1 // pred_region
      _
    $region49: #{teacher_forward.1} parent=1 // pred_fallthru
      _
    // Predicated region
    $region50: #{teacher_forward.1} parent=1 // pred_check
      _
    $region51: #{teacher_forward.1} parent=1 // pred_check_branch
      %57 = sbr.rel (0) target = $region53
    $region52: #{teacher_forward.1} parent=1 // pred_region
      _
    $region53: #{teacher_forward.1} parent=1 // pred_fallthru
      _
    // Predicated region
    $region54: #{teacher_forward.1} parent=1 // pred_check
      _
    $region55: #{teacher_forward.1} parent=1 // pred_check_branch
      %59 = sbr.rel (0) target = $region57
    $region56: #{teacher_forward.1} parent=1 // pred_region
      _
    $region57: #{teacher_forward.1} parent=1 // pred_fallthru
      _
    // Predicated region
    $region58: #{teacher_forward.1} parent=1 // pred_check
      _
    $region59: #{teacher_forward.1} parent=1 // pred_check_branch
      %61 = sbr.rel (0) target = $region61
    $region60: #{teacher_forward.1} parent=1 // pred_region
      _
    $region61: #{teacher_forward.1} parent=1 // pred_fallthru
      _
    // Predicated region
    $region62: #{teacher_forward.1} parent=1 // pred_check
      _
    $region63: #{teacher_forward.1} parent=1 // pred_check_branch
      %63 = sbr.rel (0) target = $region65
    $region64: #{teacher_forward.1} parent=1 // pred_region
      _
    $region65: #{teacher_forward.1} parent=1 // pred_fallthru
      _
    // Predicated region
    $region66: #{teacher_forward.1} parent=1 // pred_check
      _
    $region67: #{teacher_forward.1} parent=1 // pred_check_branch
      %65 = sbr.rel (0) target = $region69
    $region68: #{teacher_forward.1} parent=1 // pred_region
      _
    $region69: #{teacher_forward.1} parent=1 // pred_fallthru
      _
    // Predicated region
    $region70: #{teacher_forward.1} parent=1 // pred_check
      _
    $region71: #{teacher_forward.1} parent=1 // pred_check_branch
      %67 = sbr.rel (0) target = $region73
    $region72: #{teacher_forward.1} parent=1 // pred_region
      _
    $region73: #{teacher_forward.1} parent=1 // pred_fallthru
      _
    // Predicated region
    $region74: #{teacher_forward.1} parent=1 // pred_check
      _
    $region75: #{teacher_forward.1} parent=1 // pred_check_branch
      %69 = sbr.rel (0) target = $region77
    $region76: #{teacher_forward.1} parent=1 // pred_region
      _
    $region77: #{teacher_forward.1} parent=1 // pred_fallthru
      _
    // Predicated region
    $region78: #{teacher_forward.1} parent=1 // pred_check
      _
    $region79: #{teacher_forward.1} parent=1 // pred_check_branch
      %71 = sbr.rel (0) target = $region81
    $region80: #{teacher_forward.1} parent=1 // pred_region
      _
    $region81: #{teacher_forward.1} parent=1 // pred_fallthru
      _
    // Predicated region
    $region82: #{teacher_forward.1} parent=1 // pred_check
      _
    $region83: #{teacher_forward.1} parent=1 // pred_check_branch
      %73 = sbr.rel (0) target = $region85
    $region84: #{teacher_forward.1} parent=1 // pred_region
      _
    $region85: #{teacher_forward.1} parent=1 // pred_fallthru
      _
    // Predicated region
    $region86: #{teacher_forward.1} parent=1 // pred_check
      _
    $region87: #{teacher_forward.1} parent=1 // pred_check_branch
      %75 = sbr.rel (0) target = $region89
    $region88: #{teacher_forward.1} parent=1 // pred_region
      _
    $region89: #{teacher_forward.1} parent=1 // pred_fallthru
      _
    // Predicated region
    $region90: #{teacher_forward.1} parent=1 // pred_check
      _
    $region91: #{teacher_forward.1} parent=1 // pred_check_branch
      %77 = sbr.rel (0) target = $region93
    $region92: #{teacher_forward.1} parent=1 // pred_region
      _
    $region93: #{teacher_forward.1} parent=1 // pred_fallthru
      _
    // Predicated region
    $region94: #{teacher_forward.1} parent=1 // pred_check
      _
    $region95: #{teacher_forward.1} parent=1 // pred_check_branch
      %79 = sbr.rel (0) target = $region97
    $region96: #{teacher_forward.1} parent=1 // pred_region
      _
    $region97: #{teacher_forward.1} parent=1 // pred_fallthru
      _
    %v80 = vld [vmem:[%s1] sm:$0xff]
    %v81 = vld [vmem:[%s1 + $0x8] sm:$0xff]
    %v82 = vld [vmem:[%s0] sm:$0xff]
    %v83 = vld [vmem:[%s0 + $0x8] sm:$0xff]
    %v84 = vld [vmem:[%s2] sm:$0x1]
    %v85 = vld [vmem:[%s3] sm:$0x1]
    %vm86 = vcmask 261120
    %v87 = vsel %vm86, %v82, 0.0
    %88 = vadd.xlane.f32.xlu0 %v87
    %v89 = vpop.xlane.xlu0 %88
    %v90 = vsel %vm86, %v83, 0.0
    %91 = vadd.xlane.f32.xlu0 %v90
    %v92 = vpop.xlane.xlu0 %91
    %v93 = vrcp.pop 32.0
    %v94 = vmul.f32 32.0, %v93
    %v95 = vsub.f32 1.0, %v94
    %v96 = vmul.f32 %v93, %v95
    %v97 = vadd.f32 %v93, %v96
    %vm98 = vweird.f32 %v93
    %v99 = vsel %vm98, %v93, %v97
    %v100 = vmul.f32 %v89, %v99
    %v101 = vmul.f32 %v92, %v99
    %v102 = vsub.f32 %v82, %v100
    %v103 = vsub.f32 %v83, %v101
    %v104 = vmul.f32 %v102, %v102
    %v105 = vmul.f32 %v103, %v103
    %v106 = vsel %vm86, %v104, 0.0
    %107 = vadd.xlane.f32.xlu0 %v106
    %v108 = vpop.xlane.xlu0 %107
    %v109 = vsel %vm86, %v105, 0.0
    %110 = vadd.xlane.f32.xlu0 %v109
    %v111 = vpop.xlane.xlu0 %110
    %v112 = vmul.f32 %v108, %v99
    %v113 = vmul.f32 %v111, %v99
    %v114 = vadd.f32 %v112, 1e-12
    %v115 = vadd.f32 %v113, 1e-12
    %v116 = vrsqrt.pop %v114
    %v117 = vmul.f32 %v116, %v114
    %v118 = vmul.f32 %v117, %v116
    %v119 = vmul.f32 0.5, %v118
    %v120 = vsub.f32 1.5, %v119
    %v121 = vmul.f32 %v116, %v120
    %vm122 = vweird.f32 %v114
    %vm123 = vweird.f32 %v116
    %vm124 = vmor %vm122, %vm123
    %v125 = vsel %vm124, %v116, %v121
    %v126 = vrsqrt.pop %v115
    %v127 = vmul.f32 %v126, %v115
    %v128 = vmul.f32 %v127, %v126
    %v129 = vmul.f32 0.5, %v128
    %v130 = vsub.f32 1.5, %v129
    %v131 = vmul.f32 %v126, %v130
    %vm132 = vweird.f32 %v115
    %vm133 = vweird.f32 %v126
    %vm134 = vmor %vm132, %vm133
    %v135 = vsel %vm134, %v126, %v131
    %v136 = vmul.f32 %v102, %v125
    %v137 = vmul.f32 %v103, %v135
    %v139 = vperm.slane %v84, 0
    %v141 = vmul.f32 %v136, %v139
    %v142 = vmul.f32 %v137, %v139
    %v144 = vperm.slane %v85, 0
    %v146 = vadd.f32 %v141, %v144
    %v147 = vadd.f32 %v142, %v144
    %148 = vst.msk [vmem:[%s24] sm:$0xff] %vm86, %v146
    %149 = vst.msk [vmem:[%s24 + $0x8] sm:$0xff] %vm86, %v147
    %v150 = vld [vmem:[%s4] sm:$0xff]
    %v151 = vld [vmem:[%s4 + $0x8] sm:$0xff]
    %v152 = vld [vmem:[%s4 + $0x10] sm:$0xff]
    %v153 = vld [vmem:[%s4 + $0x18] sm:$0xff]
    %v154 = vld [vmem:[%s5] sm:$0x1]
    %v156 = vperm.slane %v154, 0
    %v159 = vsel %vm86, %v146, 0
    %v162 = vsel %vm86, %v147, 0
    %164 = vmatpush.msra.mxu0 0.0
    %165 = vmatpush.msra.mxu0 0.0
    %166 = vmatpush.msra.mxu0 0.0
    %167 = vmatpush.msra.mxu0 0.0
    %168 = vmatpush.msra.mxu0 0.0
    %169 = vmatpush.msra.mxu0 0.0
    %170 = vmatpush.msra.mxu0 0.0
    %171 = vmatpush.msra.mxu0 0.0
    %172 = vmatpush.msra.mxu0 0.0
    %173 = vmatpush.msra.mxu0 0.0
    %174 = vmatpush.msra.mxu0 0.0
    %175 = vmatpush.msra.mxu0 0.0
    %176 = vmatpush.msra.mxu0 %v153
    %177 = vmatpush.msra.mxu0 %v152
    %178 = vmatpush.msra.mxu0 %v151
    %179 = vmatpush.msra.mxu0 %v150
    %180 = vmatmul.f32.gmra.mxu0 %v159
    %v181 = vpop.f32.mrf.mxu0
    %v182 = vadd.f32 %v156, %v181
    %183 = vmatmul.f32.gmra.mxu0 %v162
    %v184 = vpop.f32.mrf.mxu0
    %v185 = vadd.f32 %v156, %v184
    %186 = vdwg.mxu0
    %v187 = vld [vmem:[%s6] sm:$0xff]
    %v188 = vld [vmem:[%s6 + $0x8] sm:$0xff]
    %v189 = vld [vmem:[%s6 + $0x10] sm:$0xff]
    %v190 = vld [vmem:[%s6 + $0x18] sm:$0xff]
    %v191 = vld [vmem:[%s7] sm:$0x1]
    %v193 = vperm.slane %v191, 0
    %195 = vmatpush.msra.mxu0 0.0
    %196 = vmatpush.msra.mxu0 0.0
    %197 = vmatpush.msra.mxu0 0.0
    %198 = vmatpush.msra.mxu0 0.0
    %199 = vmatpush.msra.mxu0 0.0
    %200 = vmatpush.msra.mxu0 0.0
    %201 = vmatpush.msra.mxu0 0.0
    %202 = vmatpush.msra.mxu0 0.0
    %203 = vmatpush.msra.mxu0 0.0
    %204 = vmatpush.msra.mxu0 0.0
    %205 = vmatpush.msra.mxu0 0.0
    %206 = vmatpush.msra.mxu0 0.0
    %207 = vmatpush.msra.mxu0 %v190
    %208 = vmatpush.msra.mxu0 %v189
    %209 = vmatpush.msra.mxu0 %v188
    %210 = vmatpush.msra.mxu0 %v187
    %211 = vmatmul.f32.gmra.mxu0 %v159
    %v212 = vpop.f32.mrf.mxu0
    %v213 = vadd.f32 %v193, %v212
    %214 = vmatmul.f32.gmra.mxu0 %v162
    %v215 = vpop.f32.mrf.mxu0
    %v216 = vadd.f32 %v193, %v215
    %217 = vdwg.mxu0
    %v218 = vld [vmem:[%s8] sm:$0xff]
    %v219 = vld [vmem:[%s8 + $0x8] sm:$0xff]
    %v220 = vld [vmem:[%s8 + $0x10] sm:$0xff]
    %v221 = vld [vmem:[%s8 + $0x18] sm:$0xff]
    %v222 = vld [vmem:[%s9] sm:$0x1]
    %v224 = vperm.slane %v222, 0
    %226 = vmatpush.msra.mxu0 0.0
    %227 = vmatpush.msra.mxu0 0.0
    %228 = vmatpush.msra.mxu0 0.0
    %229 = vmatpush.msra.mxu0 0.0
    %230 = vmatpush.msra.mxu0 0.0
    %231 = vmatpush.msra.mxu0 0.0
    %232 = vmatpush.msra.mxu0 0.0
    %233 = vmatpush.msra.mxu0 0.0
    %234 = vmatpush.msra.mxu0 0.0
    %235 = vmatpush.msra.mxu0 0.0
    %236 = vmatpush.msra.mxu0 0.0
    %237 = vmatpush.msra.mxu0 0.0
    %238 = vmatpush.msra.mxu0 %v221
    %239 = vmatpush.msra.mxu0 %v220
    %240 = vmatpush.msra.mxu0 %v219
    %241 = vmatpush.msra.mxu0 %v218
    %242 = vmatmul.f32.gmra.mxu0 %v159
    %v243 = vpop.f32.mrf.mxu0
    %v244 = vadd.f32 %v224, %v243
    %245 = vmatmul.f32.gmra.mxu0 %v162
    %v246 = vpop.f32.mrf.mxu0
    %v247 = vadd.f32 %v224, %v246
    %248 = vdwg.mxu0
    %vm249 = vcmask 130048
    %v251 = vsel %vm249, %v182, 0
    %v254 = vsel %vm249, %v185, 0
    %v257 = vsel %vm249, %v213, 0
    %v260 = vsel %vm249, %v216, 0
    %262 = vmatpush.xpose.msra.mxu0 0.0
    %263 = vmatpush.xpose.msra.mxu0 0.0
    %264 = vmatpush.xpose.msra.mxu0 0.0
    %265 = vmatpush.xpose.msra.mxu0 0.0
    %266 = vmatpush.xpose.msra.mxu0 0.0
    %267 = vmatpush.xpose.msra.mxu0 0.0
    %268 = vmatpush.xpose.msra.mxu0 0.0
    %269 = vmatpush.xpose.msra.mxu0 0.0
    %270 = vmatpush.xpose.msra.mxu0 0.0
    %271 = vmatpush.xpose.msra.mxu0 0.0
    %272 = vmatpush.xpose.msra.mxu0 0.0
    %273 = vmatpush.xpose.msra.mxu0 0.0
    %274 = vmatpush.xpose.msra.mxu0 0.0
    %275 = vmatpush.xpose.msra.mxu0 0.0
    %276 = vmatpush.xpose.msra.mxu0 %v260
    %277 = vmatpush.xpose.msra.mxu0 %v257
    %278 = vmatmul.f32.gmra.mxu0 %v251
    %v279 = vpop.f32.mrf.mxu0
    %v280 = vadd.f32 0.0, %v279
    %281 = vmatmul.f32.gmra.mxu0 %v254
    %v282 = vpop.f32.mrf.mxu0
    %v283 = vadd.f32 0.0, %v282
    %284 = vdwg.mxu0
    %v285 = vmul.f32 %v280, 0.25
    %v286 = vmul.f32 %v283, 0.25
    %v287 = vadd.f32 %v285, %v80
    %v288 = vadd.f32 %v286, %v81
    %v289 = vsel %vm249, %v287, -inf
    %290 = vmax.xlane.f32.xlu0 %v289
    %v291 = vpop.xlane.xlu0 %290
    %v292 = vsel %vm249, %v288, -inf
    %293 = vmax.xlane.f32.xlu0 %v292
    %v294 = vpop.xlane.xlu0 %293
    %v295 = vsub.f32 %v287, %v291
    %v296 = vsub.f32 %v288, %v294
    %v297 = vmul.f32 %v295, 1.442695
    %v298 = vpow.pop %v297
    %v299 = vmul.f32 %v296, 1.442695
    %v300 = vpow.pop %v299
    %v301 = vsel %vm249, %v298, 0.0
    %302 = vadd.xlane.f32.xlu0 %v301
    %v303 = vpop.xlane.xlu0 %302
    %v304 = vsel %vm249, %v300, 0.0
    %305 = vadd.xlane.f32.xlu0 %v304
    %v306 = vpop.xlane.xlu0 %305
    %v307 = vrcp.pop %v303
    %v308 = vrcp.pop %v306
    %v309 = vmul.f32 %v298, %v307
    %v310 = vmul.f32 %v300, %v308
    %v312 = vsel %vm249, %v309, 0
    %v315 = vsel %vm249, %v310, 0
    %317 = vmatpush.msra.mxu0 0.0
    %318 = vmatpush.msra.mxu0 0.0
    %319 = vmatpush.msra.mxu0 0.0
    %320 = vmatpush.msra.mxu0 0.0
    %321 = vmatpush.msra.mxu0 0.0
    %322 = vmatpush.msra.mxu0 0.0
    %323 = vmatpush.msra.mxu0 0.0
    %324 = vmatpush.msra.mxu0 0.0
    %325 = vmatpush.msra.mxu0 0.0
    %326 = vmatpush.msra.mxu0 0.0
    %327 = vmatpush.msra.mxu0 0.0
    %328 = vmatpush.msra.mxu0 0.0
    %329 = vmatpush.msra.mxu0 0.0
    %330 = vmatpush.msra.mxu0 0.0
    %331 = vmatpush.msra.mxu0 %v247
    %332 = vmatpush.msra.mxu0 %v244
    %333 = vmatmul.f32.gmra.mxu0 %v312
    %v334 = vpop.f32.mrf.mxu0
    %v335 = vadd.f32 0.0, %v334
    %336 = vmatmul.f32.gmra.mxu0 %v315
    %v337 = vpop.f32.mrf.mxu0
    %v338 = vadd.f32 0.0, %v337
    %339 = vdwg.mxu0
    %v340 = vld [vmem:[%s10] sm:$0xff]
    %v341 = vld [vmem:[%s10 + $0x8] sm:$0xff]
    %s342 = scalar_lea.vmem %s4, 32
    %v343 = vld [vmem:[%s342] sm:$0xff]
    %v344 = vld [vmem:[%s342 + $0x8] sm:$0xff]
    %v345 = vld [vmem:[%s342 + $0x10] sm:$0xff]
    %v346 = vld [vmem:[%s342 + $0x18] sm:$0xff]
    %s347 = scalar_lea.vmem %s5, 1
    %v348 = vld [vmem:[%s347] sm:$0x1]
    %v350 = vperm.slane %v348, 0
    %352 = vmatpush.msra.mxu0 0.0
    %353 = vmatpush.msra.mxu0 0.0
    %354 = vmatpush.msra.mxu0 0.0
    %355 = vmatpush.msra.mxu0 0.0
    %356 = vmatpush.msra.mxu0 0.0
    %357 = vmatpush.msra.mxu0 0.0
    %358 = vmatpush.msra.mxu0 0.0
    %359 = vmatpush.msra.mxu0 0.0
    %360 = vmatpush.msra.mxu0 0.0
    %361 = vmatpush.msra.mxu0 0.0
    %362 = vmatpush.msra.mxu0 0.0
    %363 = vmatpush.msra.mxu0 0.0
    %364 = vmatpush.msra.mxu0 %v346
    %365 = vmatpush.msra.mxu0 %v345
    %366 = vmatpush.msra.mxu0 %v344
    %367 = vmatpush.msra.mxu0 %v343
    %368 = vmatmul.f32.gmra.mxu0 %v159
    %v369 = vpop.f32.mrf.mxu0
    %v370 = vadd.f32 %v350, %v369
    %371 = vmatmul.f32.gmra.mxu0 %v162
    %v372 = vpop.f32.mrf.mxu0
    %v373 = vadd.f32 %v350, %v372
    %374 = vdwg.mxu0
    %s375 = scalar_lea.vmem %s6, 32
    %v376 = vld [vmem:[%s375] sm:$0xff]
    %v377 = vld [vmem:[%s375 + $0x8] sm:$0xff]
    %v378 = vld [vmem:[%s375 + $0x10] sm:$0xff]
    %v379 = vld [vmem:[%s375 + $0x18] sm:$0xff]
    %s380 = scalar_lea.vmem %s7, 1
    %v381 = vld [vmem:[%s380] sm:$0x1]
    %v383 = vperm.slane %v381, 0
    %385 = vmatpush.msra.mxu0 0.0
    %386 = vmatpush.msra.mxu0 0.0
    %387 = vmatpush.msra.mxu0 0.0
    %388 = vmatpush.msra.mxu0 0.0
    %389 = vmatpush.msra.mxu0 0.0
    %390 = vmatpush.msra.mxu0 0.0
    %391 = vmatpush.msra.mxu0 0.0
    %392 = vmatpush.msra.mxu0 0.0
    %393 = vmatpush.msra.mxu0 0.0
    %394 = vmatpush.msra.mxu0 0.0
    %395 = vmatpush.msra.mxu0 0.0
    %396 = vmatpush.msra.mxu0 0.0
    %397 = vmatpush.msra.mxu0 %v379
    %398 = vmatpush.msra.mxu0 %v378
    %399 = vmatpush.msra.mxu0 %v377
    %400 = vmatpush.msra.mxu0 %v376
    %401 = vmatmul.f32.gmra.mxu0 %v159
    %v402 = vpop.f32.mrf.mxu0
    %v403 = vadd.f32 %v383, %v402
    %404 = vmatmul.f32.gmra.mxu0 %v162
    %v405 = vpop.f32.mrf.mxu0
    %v406 = vadd.f32 %v383, %v405
    %407 = vdwg.mxu0
    %s408 = scalar_lea.vmem %s8, 32
    %v409 = vld [vmem:[%s408] sm:$0xff]
    %v410 = vld [vmem:[%s408 + $0x8] sm:$0xff]
    %v411 = vld [vmem:[%s408 + $0x10] sm:$0xff]
    %v412 = vld [vmem:[%s408 + $0x18] sm:$0xff]
    %s413 = scalar_lea.vmem %s9, 1
    %v414 = vld [vmem:[%s413] sm:$0x1]
    %v416 = vperm.slane %v414, 0
    %418 = vmatpush.msra.mxu0 0.0
    %419 = vmatpush.msra.mxu0 0.0
    %420 = vmatpush.msra.mxu0 0.0
    %421 = vmatpush.msra.mxu0 0.0
    %422 = vmatpush.msra.mxu0 0.0
    %423 = vmatpush.msra.mxu0 0.0
    %424 = vmatpush.msra.mxu0 0.0
    %425 = vmatpush.msra.mxu0 0.0
    %426 = vmatpush.msra.mxu0 0.0
    %427 = vmatpush.msra.mxu0 0.0
    %428 = vmatpush.msra.mxu0 0.0
    %429 = vmatpush.msra.mxu0 0.0
    %430 = vmatpush.msra.mxu0 %v412
    %431 = vmatpush.msra.mxu0 %v411
    %432 = vmatpush.msra.mxu0 %v410
    %433 = vmatpush.msra.mxu0 %v409
    %434 = vmatmul.f32.gmra.mxu0 %v159
    %v435 = vpop.f32.mrf.mxu0
    %v436 = vadd.f32 %v416, %v435
    %437 = vmatmul.f32.gmra.mxu0 %v162
    %v438 = vpop.f32.mrf.mxu0
    %v439 = vadd.f32 %v416, %v438
    %440 = vdwg.mxu0
    %v442 = vsel %vm249, %v370, 0
    %v445 = vsel %vm249, %v373, 0
    %v448 = vsel %vm249, %v403, 0
    %v451 = vsel %vm249, %v406, 0
    %453 = vmatpush.xpose.msra.mxu0 0.0
    %454 = vmatpush.xpose.msra.mxu0 0.0
    %455 = vmatpush.xpose.msra.mxu0 0.0
    %456 = vmatpush.xpose.msra.mxu0 0.0
    %457 = vmatpush.xpose.msra.mxu0 0.0
    %458 = vmatpush.xpose.msra.mxu0 0.0
    %459 = vmatpush.xpose.msra.mxu0 0.0
    %460 = vmatpush.xpose.msra.mxu0 0.0
    %461 = vmatpush.xpose.msra.mxu0 0.0
    %462 = vmatpush.xpose.msra.mxu0 0.0
    %463 = vmatpush.xpose.msra.mxu0 0.0
    %464 = vmatpush.xpose.msra.mxu0 0.0
    %465 = vmatpush.xpose.msra.mxu0 0.0
    %466 = vmatpush.xpose.msra.mxu0 0.0
    %467 = vmatpush.xpose.msra.mxu0 %v451
    %468 = vmatpush.xpose.msra.mxu0 %v448
    %469 = vmatmul.f32.gmra.mxu0 %v442
    %v470 = vpop.f32.mrf.mxu0
    %v471 = vadd.f32 0.0, %v470
    %472 = vmatmul.f32.gmra.mxu0 %v445
    %v473 = vpop.f32.mrf.mxu0
    %v474 = vadd.f32 0.0, %v473
    %475 = vdwg.mxu0
    %v476 = vmul.f32 %v471, 0.25
    %v477 = vmul.f32 %v474, 0.25
    %v478 = vadd.f32 %v476, %v80
    %v479 = vadd.f32 %v477, %v81
    %v480 = vsel %vm249, %v478, -inf
    %481 = vmax.xlane.f32.xlu0 %v480
    %v482 = vpop.xlane.xlu0 %481
    %v483 = vsel %vm249, %v479, -inf
    %484 = vmax.xlane.f32.xlu0 %v483
    %v485 = vpop.xlane.xlu0 %484
    %v486 = vsub.f32 %v478, %v482
    %v487 = vsub.f32 %v479, %v485
    %v488 = vmul.f32 %v486, 1.442695
    %v489 = vpow.pop %v488
    %v490 = vmul.f32 %v487, 1.442695
    %v491 = vpow.pop %v490
    %v492 = vsel %vm249, %v489, 0.0
    %493 = vadd.xlane.f32.xlu0 %v492
    %v494 = vpop.xlane.xlu0 %493
    %v495 = vsel %vm249, %v491, 0.0
    %496 = vadd.xlane.f32.xlu0 %v495
    %v497 = vpop.xlane.xlu0 %496
    %v498 = vrcp.pop %v494
    %v499 = vrcp.pop %v497
    %v500 = vmul.f32 %v489, %v498
    %v501 = vmul.f32 %v491, %v499
    %v503 = vsel %vm249, %v500, 0
    %v506 = vsel %vm249, %v501, 0
    %508 = vmatpush.msra.mxu0 0.0
    %509 = vmatpush.msra.mxu0 0.0
    %510 = vmatpush.msra.mxu0 0.0
    %511 = vmatpush.msra.mxu0 0.0
    %512 = vmatpush.msra.mxu0 0.0
    %513 = vmatpush.msra.mxu0 0.0
    %514 = vmatpush.msra.mxu0 0.0
    %515 = vmatpush.msra.mxu0 0.0
    %516 = vmatpush.msra.mxu0 0.0
    %517 = vmatpush.msra.mxu0 0.0
    %518 = vmatpush.msra.mxu0 0.0
    %519 = vmatpush.msra.mxu0 0.0
    %520 = vmatpush.msra.mxu0 0.0
    %521 = vmatpush.msra.mxu0 0.0
    %522 = vmatpush.msra.mxu0 %v439
    %523 = vmatpush.msra.mxu0 %v436
    %524 = vmatmul.f32.gmra.mxu0 %v503
    %v525 = vpop.f32.mrf.mxu0
    %v526 = vadd.f32 0.0, %v525
    %527 = vmatmul.f32.gmra.mxu0 %v506
    %v528 = vpop.f32.mrf.mxu0
    %v529 = vadd.f32 0.0, %v528
    %530 = vdwg.mxu0
    %s531 = scalar_lea.vmem %s10, 16
    %v532 = vld [vmem:[%s531] sm:$0xff]
    %v533 = vld [vmem:[%s531 + $0x8] sm:$0xff]
    %v535 = vsel %vm249, %v526, 0
    %v538 = vsel %vm249, %v529, 0
    %540 = vmatpush.msra.mxu0 0.0
    %541 = vmatpush.msra.mxu0 0.0
    %542 = vmatpush.msra.mxu0 0.0
    %543 = vmatpush.msra.mxu0 0.0
    %544 = vmatpush.msra.mxu0 0.0
    %545 = vmatpush.msra.mxu0 0.0
    %546 = vmatpush.msra.mxu0 0.0
    %547 = vmatpush.msra.mxu0 0.0
    %548 = vmatpush.msra.mxu0 0.0
    %549 = vmatpush.msra.mxu0 0.0
    %550 = vmatpush.msra.mxu0 0.0
    %551 = vmatpush.msra.mxu0 0.0
    %552 = vmatpush.msra.mxu0 0.0
    %553 = vmatpush.msra.mxu0 0.0
    %554 = vmatpush.msra.mxu0 %v533
    %555 = vmatpush.msra.mxu0 %v532
    %556 = vmatmul.f32.gmra.mxu0 %v535
    %v557 = vpop.f32.mrf.mxu0
    %v558 = vadd.f32 0.0, %v557
    %559 = vmatmul.f32.gmra.mxu0 %v538
    %v560 = vpop.f32.mrf.mxu0
    %v561 = vadd.f32 0.0, %v560
    %562 = vdwg.mxu0
    %v564 = vsel %vm249, %v335, 0
    %v567 = vsel %vm249, %v338, 0
    %569 = vmatpush.msra.mxu0 0.0
    %570 = vmatpush.msra.mxu0 0.0
    %571 = vmatpush.msra.mxu0 0.0
    %572 = vmatpush.msra.mxu0 0.0
    %573 = vmatpush.msra.mxu0 0.0
    %574 = vmatpush.msra.mxu0 0.0
    %575 = vmatpush.msra.mxu0 0.0
    %576 = vmatpush.msra.mxu0 0.0
    %577 = vmatpush.msra.mxu0 0.0
    %578 = vmatpush.msra.mxu0 0.0
    %579 = vmatpush.msra.mxu0 0.0
    %580 = vmatpush.msra.mxu0 0.0
    %581 = vmatpush.msra.mxu0 0.0
    %582 = vmatpush.msra.mxu0 0.0
    %583 = vmatpush.msra.mxu0 %v341
    %584 = vmatpush.msra.mxu0 %v340
    %585 = vmatmul.f32.gmra.mxu0 %v564
    %v586 = vpop.f32.mrf.mxu0
    %v587 = vadd.f32 %v558, %v586
    %588 = vmatmul.f32.gmra.mxu0 %v567
    %v589 = vpop.f32.mrf.mxu0
    %v590 = vadd.f32 %v561, %v589
    %591 = vdwg.mxu0
    %v592 = vld [vmem:[%s11] sm:$0x1]
    %v594 = vperm.slane %v592, 0
    %v596 = vadd.f32 %v587, %v594
    %v597 = vadd.f32 %v590, %v594
    %v598 = vadd.f32 %v596, %v146
    %v599 = vadd.f32 %v597, %v147
    %v600 = vld [vmem:[%s12] sm:$0x1]
    %v601 = vld [vmem:[%s13] sm:$0x1]
    %v602 = vsel %vm86, %v598, 0.0
    %603 = vadd.xlane.f32.xlu0 %v602
    %v604 = vpop.xlane.xlu0 %603
    %v605 = vsel %vm86, %v599, 0.0
    %606 = vadd.xlane.f32.xlu0 %v605
    %v607 = vpop.xlane.xlu0 %606
    %v608 = vmul.f32 %v604, %v99
    %v609 = vmul.f32 %v607, %v99
    %v610 = vsub.f32 %v598, %v608
    %v611 = vsub.f32 %v599, %v609
    %v612 = vmul.f32 %v610, %v610
    %v613 = vmul.f32 %v611, %v611
    %v614 = vsel %vm86, %v612, 0.0
    %615 = vadd.xlane.f32.xlu0 %v614
    %v616 = vpop.xlane.xlu0 %615
    %v617 = vsel %vm86, %v613, 0.0
    %618 = vadd.xlane.f32.xlu0 %v617
    %v619 = vpop.xlane.xlu0 %618
    %v620 = vmul.f32 %v616, %v99
    %v621 = vmul.f32 %v619, %v99
    %v622 = vadd.f32 %v620, 1e-12
    %v623 = vadd.f32 %v621, 1e-12
    %v624 = vrsqrt.pop %v622
    %v625 = vmul.f32 %v624, %v622
    %v626 = vmul.f32 %v625, %v624
    %v627 = vmul.f32 0.5, %v626
    %v628 = vsub.f32 1.5, %v627
    %v629 = vmul.f32 %v624, %v628
    %vm630 = vweird.f32 %v622
    %vm631 = vweird.f32 %v624
    %vm632 = vmor %vm630, %vm631
    %v633 = vsel %vm632, %v624, %v629
    %v634 = vrsqrt.pop %v623
    %v635 = vmul.f32 %v634, %v623
    %v636 = vmul.f32 %v635, %v634
    %v637 = vmul.f32 0.5, %v636
    %v638 = vsub.f32 1.5, %v637
    %v639 = vmul.f32 %v634, %v638
    %vm640 = vweird.f32 %v623
    %vm641 = vweird.f32 %v634
    %vm642 = vmor %vm640, %vm641
    %v643 = vsel %vm642, %v634, %v639
    %v644 = vmul.f32 %v610, %v633
    %v645 = vmul.f32 %v611, %v643
    %v647 = vperm.slane %v600, 0
    %v649 = vmul.f32 %v644, %v647
    %v650 = vmul.f32 %v645, %v647
    %v652 = vperm.slane %v601, 0
    %v654 = vadd.f32 %v649, %v652
    %v655 = vadd.f32 %v650, %v652
    %v656 = vld [vmem:[%s14] sm:$0xff]
    %v657 = vld [vmem:[%s14 + $0x8] sm:$0xff]
    %v658 = vld [vmem:[%s14 + $0x10] sm:$0xff]
    %v659 = vld [vmem:[%s14 + $0x18] sm:$0xff]
    %v660 = vld [vmem:[%s15] sm:$0x1]
    %v662 = vperm.slane %v660, 0
    %v665 = vsel %vm86, %v654, 0
    %v668 = vsel %vm86, %v655, 0
    %670 = vmatpush.msra.mxu0 0.0
    %671 = vmatpush.msra.mxu0 0.0
    %672 = vmatpush.msra.mxu0 0.0
    %673 = vmatpush.msra.mxu0 0.0
    %674 = vmatpush.msra.mxu0 0.0
    %675 = vmatpush.msra.mxu0 0.0
    %676 = vmatpush.msra.mxu0 0.0
    %677 = vmatpush.msra.mxu0 0.0
    %678 = vmatpush.msra.mxu0 0.0
    %679 = vmatpush.msra.mxu0 0.0
    %680 = vmatpush.msra.mxu0 0.0
    %681 = vmatpush.msra.mxu0 0.0
    %682 = vmatpush.msra.mxu0 %v659
    %683 = vmatpush.msra.mxu0 %v658
    %684 = vmatpush.msra.mxu0 %v657
    %685 = vmatpush.msra.mxu0 %v656
    %686 = vmatmul.f32.gmra.mxu0 %v665
    %v687 = vpop.f32.mrf.mxu0
    %v688 = vadd.f32 %v662, %v687
    %689 = vmatmul.f32.gmra.mxu0 %v668
    %v690 = vpop.f32.mrf.mxu0
    %v691 = vadd.f32 %v662, %v690
    %692 = vdwg.mxu0
    %v693 = vmul.f32 %v688, %v688
    %v694 = vmul.f32 %v691, %v691
    %v695 = vmul.f32 %v688, %v693
    %v696 = vmul.f32 %v691, %v694
    %v697 = vmul.f32 %v695, 0.044715
    %v698 = vmul.f32 %v696, 0.044715
    %v699 = vadd.f32 %v688, %v697
    %v700 = vadd.f32 %v691, %v698
    %v701 = vmul.f32 %v699, 0.7978846
    %v702 = vmul.f32 %v700, 0.7978846
    %v703 = vtanh.pop %v701
    %v704 = vtanh.pop %v702
    %v705 = vadd.f32 %v703, 1.0
    %v706 = vadd.f32 %v704, 1.0
    %v707 = vmul.f32 %v705, 0.5
    %v708 = vmul.f32 %v706, 0.5
    %v709 = vmul.f32 %v688, %v707
    %v710 = vmul.f32 %v691, %v708
    %v711 = vld [vmem:[%s16] sm:$0xff]
    %v712 = vld [vmem:[%s16 + $0x8] sm:$0xff]
    %v713 = vld [vmem:[%s16 + $0x10] sm:$0xff]
    %v714 = vld [vmem:[%s16 + $0x18] sm:$0xff]
    %v715 = vld [vmem:[%s16 + $0x20] sm:$0xff]
    %v716 = vld [vmem:[%s16 + $0x28] sm:$0xff]
    %v717 = vld [vmem:[%s16 + $0x30] sm:$0xff]
    %v718 = vld [vmem:[%s16 + $0x38] sm:$0xff]
    %v719 = vld [vmem:[%s17] sm:$0x1]
    %v721 = vperm.slane %v719, 0
    %vm723 = vcmask 523264
    %v725 = vsel %vm723, %v709, 0
    %v728 = vsel %vm723, %v710, 0
    %730 = vmatpush.msra.mxu0 0.0
    %731 = vmatpush.msra.mxu0 0.0
    %732 = vmatpush.msra.mxu0 0.0
    %733 = vmatpush.msra.mxu0 0.0
    %734 = vmatpush.msra.mxu0 0.0
    %735 = vmatpush.msra.mxu0 0.0
    %736 = vmatpush.msra.mxu0 0.0
    %737 = vmatpush.msra.mxu0 0.0
    %738 = vmatpush.msra.mxu0 %v718
    %739 = vmatpush.msra.mxu0 %v717
    %740 = vmatpush.msra.mxu0 %v716
    %741 = vmatpush.msra.mxu0 %v715
    %742 = vmatpush.msra.mxu0 %v714
    %743 = vmatpush.msra.mxu0 %v713
    %744 = vmatpush.msra.mxu0 %v712
    %745 = vmatpush.msra.mxu0 %v711
    %746 = vmatmul.f32.gmra.mxu0 %v725
    %v747 = vpop.f32.mrf.mxu0
    %v748 = vadd.f32 %v721, %v747
    %749 = vmatmul.f32.gmra.mxu0 %v728
    %v750 = vpop.f32.mrf.mxu0
    %v751 = vadd.f32 %v721, %v750
    %752 = vdwg.mxu0
    %v753 = vadd.f32 %v748, %v654
    %v754 = vadd.f32 %v751, %v655
    %v755 = vld [vmem:[%s18] sm:$0x1]
    %v756 = vld [vmem:[%s19] sm:$0x1]
    %v757 = vsel %vm86, %v753, 0.0
    %758 = vadd.xlane.f32.xlu0 %v757
    %v759 = vpop.xlane.xlu0 %758
    %v760 = vsel %vm86, %v754, 0.0
    %761 = vadd.xlane.f32.xlu0 %v760
    %v762 = vpop.xlane.xlu0 %761
    %v763 = vmul.f32 %v759, %v99
    %v764 = vmul.f32 %v762, %v99
    %v765 = vsub.f32 %v753, %v763
    %v766 = vsub.f32 %v754, %v764
    %v767 = vmul.f32 %v765, %v765
    %v768 = vmul.f32 %v766, %v766
    %v769 = vsel %vm86, %v767, 0.0
    %770 = vadd.xlane.f32.xlu0 %v769
    %v771 = vpop.xlane.xlu0 %770
    %v772 = vsel %vm86, %v768, 0.0
    %773 = vadd.xlane.f32.xlu0 %v772
    %v774 = vpop.xlane.xlu0 %773
    %v775 = vmul.f32 %v771, %v99
    %v776 = vmul.f32 %v774, %v99
    %v777 = vadd.f32 %v775, 1e-12
    %v778 = vadd.f32 %v776, 1e-12
    %v779 = vrsqrt.pop %v777
    %v780 = vmul.f32 %v779, %v777
    %v781 = vmul.f32 %v780, %v779
    %v782 = vmul.f32 0.5, %v781
    %v783 = vsub.f32 1.5, %v782
    %v784 = vmul.f32 %v779, %v783
    %vm785 = vweird.f32 %v777
    %vm786 = vweird.f32 %v779
    %vm787 = vmor %vm785, %vm786
    %v788 = vsel %vm787, %v779, %v784
    %v789 = vrsqrt.pop %v778
    %v790 = vmul.f32 %v789, %v778
    %v791 = vmul.f32 %v790, %v789
    %v792 = vmul.f32 0.5, %v791
    %v793 = vsub.f32 1.5, %v792
    %v794 = vmul.f32 %v789, %v793
    %vm795 = vweird.f32 %v778
    %vm796 = vweird.f32 %v789
    %vm797 = vmor %vm795, %vm796
    %v798 = vsel %vm797, %v789, %v794
    %v799 = vmul.f32 %v765, %v788
    %v800 = vmul.f32 %v766, %v798
    %v802 = vperm.slane %v755, 0
    %v804 = vmul.f32 %v799, %v802
    %v805 = vmul.f32 %v800, %v802
    %v807 = vperm.slane %v756, 0
    %v809 = vadd.f32 %v804, %v807
    %v810 = vadd.f32 %v805, %v807
    %s811 = scalar_lea.vmem %s24, 16
    %812 = vst.msk [vmem:[%s811] sm:$0xff] %vm86, %v809
    %813 = vst.msk [vmem:[%s811 + $0x8] sm:$0xff] %vm86, %v810
    %s814 = scalar_lea.vmem %s4, 64
    %v815 = vld [vmem:[%s814] sm:$0xff]
    %v816 = vld [vmem:[%s814 + $0x8] sm:$0xff]
    %v817 = vld [vmem:[%s814 + $0x10] sm:$0xff]
    %v818 = vld [vmem:[%s814 + $0x18] sm:$0xff]
    %s819 = scalar_lea.vmem %s5, 2
    %v820 = vld [vmem:[%s819] sm:$0x1]
    %v822 = vperm.slane %v820, 0
    %v825 = vsel %vm86, %v809, 0
    %v828 = vsel %vm86, %v810, 0
    %830 = vmatpush.msra.mxu0 0.0
    %831 = vmatpush.msra.mxu0 0.0
    %832 = vmatpush.msra.mxu0 0.0
    %833 = vmatpush.msra.mxu0 0.0
    %834 = vmatpush.msra.mxu0 0.0
    %835 = vmatpush.msra.mxu0 0.0
    %836 = vmatpush.msra.mxu0 0.0
    %837 = vmatpush.msra.mxu0 0.0
    %838 = vmatpush.msra.mxu0 0.0
    %839 = vmatpush.msra.mxu0 0.0
    %840 = vmatpush.msra.mxu0 0.0
    %841 = vmatpush.msra.mxu0 0.0
    %842 = vmatpush.msra.mxu0 %v818
    %843 = vmatpush.msra.mxu0 %v817
    %844 = vmatpush.msra.mxu0 %v816
    %845 = vmatpush.msra.mxu0 %v815
    %846 = vmatmul.f32.gmra.mxu0 %v825
    %v847 = vpop.f32.mrf.mxu0
    %v848 = vadd.f32 %v822, %v847
    %849 = vmatmul.f32.gmra.mxu0 %v828
    %v850 = vpop.f32.mrf.mxu0
    %v851 = vadd.f32 %v822, %v850
    %852 = vdwg.mxu0
    %s853 = scalar_lea.vmem %s6, 64
    %v854 = vld [vmem:[%s853] sm:$0xff]
    %v855 = vld [vmem:[%s853 + $0x8] sm:$0xff]
    %v856 = vld [vmem:[%s853 + $0x10] sm:$0xff]
    %v857 = vld [vmem:[%s853 + $0x18] sm:$0xff]
    %s858 = scalar_lea.vmem %s7, 2
    %v859 = vld [vmem:[%s858] sm:$0x1]
    %v861 = vperm.slane %v859, 0
    %863 = vmatpush.msra.mxu0 0.0
    %864 = vmatpush.msra.mxu0 0.0
    %865 = vmatpush.msra.mxu0 0.0
    %866 = vmatpush.msra.mxu0 0.0
    %867 = vmatpush.msra.mxu0 0.0
    %868 = vmatpush.msra.mxu0 0.0
    %869 = vmatpush.msra.mxu0 0.0
    %870 = vmatpush.msra.mxu0 0.0
    %871 = vmatpush.msra.mxu0 0.0
    %872 = vmatpush.msra.mxu0 0.0
    %873 = vmatpush.msra.mxu0 0.0
    %874 = vmatpush.msra.mxu0 0.0
    %875 = vmatpush.msra.mxu0 %v857
    %876 = vmatpush.msra.mxu0 %v856
    %877 = vmatpush.msra.mxu0 %v855
    %878 = vmatpush.msra.mxu0 %v854
    %879 = vmatmul.f32.gmra.mxu0 %v825
    %v880 = vpop.f32.mrf.mxu0
    %v881 = vadd.f32 %v861, %v880
    %882 = vmatmul.f32.gmra.mxu0 %v828
    %v883 = vpop.f32.mrf.mxu0
    %v884 = vadd.f32 %v861, %v883
    %885 = vdwg.mxu0
    %s886 = scalar_lea.vmem %s8, 64
    %v887 = vld [vmem:[%s886] sm:$0xff]
    %v888 = vld [vmem:[%s886 + $0x8] sm:$0xff]
    %v889 = vld [vmem:[%s886 + $0x10] sm:$0xff]
    %v890 = vld [vmem:[%s886 + $0x18] sm:$0xff]
    %s891 = scalar_lea.vmem %s9, 2
    %v892 = vld [vmem:[%s891] sm:$0x1]
    %v894 = vperm.slane %v892, 0
    %896 = vmatpush.msra.mxu0 0.0
    %897 = vmatpush.msra.mxu0 0.0
    %898 = vmatpush.msra.mxu0 0.0
    %899 = vmatpush.msra.mxu0 0.0
    %900 = vmatpush.msra.mxu0 0.0
    %901 = vmatpush.msra.mxu0 0.0
    %902 = vmatpush.msra.mxu0 0.0
    %903 = vmatpush.msra.mxu0 0.0
    %904 = vmatpush.msra.mxu0 0.0
    %905 = vmatpush.msra.mxu0 0.0
    %906 = vmatpush.msra.mxu0 0.0
    %907 = vmatpush.msra.mxu0 0.0
    %908 = vmatpush.msra.mxu0 %v890
    %909 = vmatpush.msra.mxu0 %v889
    %910 = vmatpush.msra.mxu0 %v888
    %911 = vmatpush.msra.mxu0 %v887
    %912 = vmatmul.f32.gmra.mxu0 %v825
    %v913 = vpop.f32.mrf.mxu0
    %v914 = vadd.f32 %v894, %v913
    %915 = vmatmul.f32.gmra.mxu0 %v828
    %v916 = vpop.f32.mrf.mxu0
    %v917 = vadd.f32 %v894, %v916
    %918 = vdwg.mxu0
    %v920 = vsel %vm249, %v848, 0
    %v923 = vsel %vm249, %v851, 0
    %v926 = vsel %vm249, %v881, 0
    %v929 = vsel %vm249, %v884, 0
    %931 = vmatpush.xpose.msra.mxu0 0.0
    %932 = vmatpush.xpose.msra.mxu0 0.0
    %933 = vmatpush.xpose.msra.mxu0 0.0
    %934 = vmatpush.xpose.msra.mxu0 0.0
    %935 = vmatpush.xpose.msra.mxu0 0.0
    %936 = vmatpush.xpose.msra.mxu0 0.0
    %937 = vmatpush.xpose.msra.mxu0 0.0
    %938 = vmatpush.xpose.msra.mxu0 0.0
    %939 = vmatpush.xpose.msra.mxu0 0.0
    %940 = vmatpush.xpose.msra.mxu0 0.0
    %941 = vmatpush.xpose.msra.mxu0 0.0
    %942 = vmatpush.xpose.msra.mxu0 0.0
    %943 = vmatpush.xpose.msra.mxu0 0.0
    %944 = vmatpush.xpose.msra.mxu0 0.0
    %945 = vmatpush.xpose.msra.mxu0 %v929
    %946 = vmatpush.xpose.msra.mxu0 %v926
    %947 = vmatmul.f32.gmra.mxu0 %v920
    %v948 = vpop.f32.mrf.mxu0
    %v949 = vadd.f32 0.0, %v948
    %950 = vmatmul.f32.gmra.mxu0 %v923
    %v951 = vpop.f32.mrf.mxu0
    %v952 = vadd.f32 0.0, %v951
    %953 = vdwg.mxu0
    %v954 = vmul.f32 %v949, 0.25
    %v955 = vmul.f32 %v952, 0.25
    %v956 = vadd.f32 %v954, %v80
    %v957 = vadd.f32 %v955, %v81
    %v958 = vsel %vm249, %v956, -inf
    %959 = vmax.xlane.f32.xlu0 %v958
    %v960 = vpop.xlane.xlu0 %959
    %v961 = vsel %vm249, %v957, -inf
    %962 = vmax.xlane.f32.xlu0 %v961
    %v963 = vpop.xlane.xlu0 %962
    %v964 = vsub.f32 %v956, %v960
    %v965 = vsub.f32 %v957, %v963
    %v966 = vmul.f32 %v964, 1.442695
    %v967 = vpow.pop %v966
    %v968 = vmul.f32 %v965, 1.442695
    %v969 = vpow.pop %v968
    %v970 = vsel %vm249, %v967, 0.0
    %971 = vadd.xlane.f32.xlu0 %v970
    %v972 = vpop.xlane.xlu0 %971
    %v973 = vsel %vm249, %v969, 0.0
    %974 = vadd.xlane.f32.xlu0 %v973
    %v975 = vpop.xlane.xlu0 %974
    %v976 = vrcp.pop %v972
    %v977 = vrcp.pop %v975
    %v978 = vmul.f32 %v967, %v976
    %v979 = vmul.f32 %v969, %v977
    %v981 = vsel %vm249, %v978, 0
    %v984 = vsel %vm249, %v979, 0
    %986 = vmatpush.msra.mxu0 0.0
    %987 = vmatpush.msra.mxu0 0.0
    %988 = vmatpush.msra.mxu0 0.0
    %989 = vmatpush.msra.mxu0 0.0
    %990 = vmatpush.msra.mxu0 0.0
    %991 = vmatpush.msra.mxu0 0.0
    %992 = vmatpush.msra.mxu0 0.0
    %993 = vmatpush.msra.mxu0 0.0
    %994 = vmatpush.msra.mxu0 0.0
    %995 = vmatpush.msra.mxu0 0.0
    %996 = vmatpush.msra.mxu0 0.0
    %997 = vmatpush.msra.mxu0 0.0
    %998 = vmatpush.msra.mxu0 0.0
    %999 = vmatpush.msra.mxu0 0.0
    %1000 = vmatpush.msra.mxu0 %v917
    %1001 = vmatpush.msra.mxu0 %v914
    %1002 = vmatmul.f32.gmra.mxu0 %v981
    %v1003 = vpop.f32.mrf.mxu0
    %v1004 = vadd.f32 0.0, %v1003
    %1005 = vmatmul.f32.gmra.mxu0 %v984
    %v1006 = vpop.f32.mrf.mxu0
    %v1007 = vadd.f32 0.0, %v1006
    %1008 = vdwg.mxu0
    %s1009 = scalar_lea.vmem %s10, 32
    %v1010 = vld [vmem:[%s1009] sm:$0xff]
    %v1011 = vld [vmem:[%s1009 + $0x8] sm:$0xff]
    %s1012 = scalar_lea.vmem %s4, 96
    %v1013 = vld [vmem:[%s1012] sm:$0xff]
    %v1014 = vld [vmem:[%s1012 + $0x8] sm:$0xff]
    %v1015 = vld [vmem:[%s1012 + $0x10] sm:$0xff]
    %v1016 = vld [vmem:[%s1012 + $0x18] sm:$0xff]
    %s1017 = scalar_lea.vmem %s5, 3
    %v1018 = vld [vmem:[%s1017] sm:$0x1]
    %v1020 = vperm.slane %v1018, 0
    %1022 = vmatpush.msra.mxu0 0.0
    %1023 = vmatpush.msra.mxu0 0.0
    %1024 = vmatpush.msra.mxu0 0.0
    %1025 = vmatpush.msra.mxu0 0.0
    %1026 = vmatpush.msra.mxu0 0.0
    %1027 = vmatpush.msra.mxu0 0.0
    %1028 = vmatpush.msra.mxu0 0.0
    %1029 = vmatpush.msra.mxu0 0.0
    %1030 = vmatpush.msra.mxu0 0.0
    %1031 = vmatpush.msra.mxu0 0.0
    %1032 = vmatpush.msra.mxu0 0.0
    %1033 = vmatpush.msra.mxu0 0.0
    %1034 = vmatpush.msra.mxu0 %v1016
    %1035 = vmatpush.msra.mxu0 %v1015
    %1036 = vmatpush.msra.mxu0 %v1014
    %1037 = vmatpush.msra.mxu0 %v1013
    %1038 = vmatmul.f32.gmra.mxu0 %v825
    %v1039 = vpop.f32.mrf.mxu0
    %v1040 = vadd.f32 %v1020, %v1039
    %1041 = vmatmul.f32.gmra.mxu0 %v828
    %v1042 = vpop.f32.mrf.mxu0
    %v1043 = vadd.f32 %v1020, %v1042
    %1044 = vdwg.mxu0
    %s1045 = scalar_lea.vmem %s6, 96
    %v1046 = vld [vmem:[%s1045] sm:$0xff]
    %v1047 = vld [vmem:[%s1045 + $0x8] sm:$0xff]
    %v1048 = vld [vmem:[%s1045 + $0x10] sm:$0xff]
    %v1049 = vld [vmem:[%s1045 + $0x18] sm:$0xff]
    %s1050 = scalar_lea.vmem %s7, 3
    %v1051 = vld [vmem:[%s1050] sm:$0x1]
    %v1053 = vperm.slane %v1051, 0
    %1055 = vmatpush.msra.mxu0 0.0
    %1056 = vmatpush.msra.mxu0 0.0
    %1057 = vmatpush.msra.mxu0 0.0
    %1058 = vmatpush.msra.mxu0 0.0
    %1059 = vmatpush.msra.mxu0 0.0
    %1060 = vmatpush.msra.mxu0 0.0
    %1061 = vmatpush.msra.mxu0 0.0
    %1062 = vmatpush.msra.mxu0 0.0
    %1063 = vmatpush.msra.mxu0 0.0
    %1064 = vmatpush.msra.mxu0 0.0
    %1065 = vmatpush.msra.mxu0 0.0
    %1066 = vmatpush.msra.mxu0 0.0
    %1067 = vmatpush.msra.mxu0 %v1049
    %1068 = vmatpush.msra.mxu0 %v1048
    %1069 = vmatpush.msra.mxu0 %v1047
    %1070 = vmatpush.msra.mxu0 %v1046
    %1071 = vmatmul.f32.gmra.mxu0 %v825
    %v1072 = vpop.f32.mrf.mxu0
    %v1073 = vadd.f32 %v1053, %v1072
    %1074 = vmatmul.f32.gmra.mxu0 %v828
    %v1075 = vpop.f32.mrf.mxu0
    %v1076 = vadd.f32 %v1053, %v1075
    %1077 = vdwg.mxu0
    %s1078 = scalar_lea.vmem %s8, 96
    %v1079 = vld [vmem:[%s1078] sm:$0xff]
    %v1080 = vld [vmem:[%s1078 + $0x8] sm:$0xff]
    %v1081 = vld [vmem:[%s1078 + $0x10] sm:$0xff]
    %v1082 = vld [vmem:[%s1078 + $0x18] sm:$0xff]
    %s1083 = scalar_lea.vmem %s9, 3
    %v1084 = vld [vmem:[%s1083] sm:$0x1]
    %v1086 = vperm.slane %v1084, 0
    %1088 = vmatpush.msra.mxu0 0.0
    %1089 = vmatpush.msra.mxu0 0.0
    %1090 = vmatpush.msra.mxu0 0.0
    %1091 = vmatpush.msra.mxu0 0.0
    %1092 = vmatpush.msra.mxu0 0.0
    %1093 = vmatpush.msra.mxu0 0.0
    %1094 = vmatpush.msra.mxu0 0.0
    %1095 = vmatpush.msra.mxu0 0.0
    %1096 = vmatpush.msra.mxu0 0.0
    %1097 = vmatpush.msra.mxu0 0.0
    %1098 = vmatpush.msra.mxu0 0.0
    %1099 = vmatpush.msra.mxu0 0.0
    %1100 = vmatpush.msra.mxu0 %v1082
    %1101 = vmatpush.msra.mxu0 %v1081
    %1102 = vmatpush.msra.mxu0 %v1080
    %1103 = vmatpush.msra.mxu0 %v1079
    %1104 = vmatmul.f32.gmra.mxu0 %v825
    %v1105 = vpop.f32.mrf.mxu0
    %v1106 = vadd.f32 %v1086, %v1105
    %1107 = vmatmul.f32.gmra.mxu0 %v828
    %v1108 = vpop.f32.mrf.mxu0
    %v1109 = vadd.f32 %v1086, %v1108
    %1110 = vdwg.mxu0
    %v1112 = vsel %vm249, %v1040, 0
    %v1115 = vsel %vm249, %v1043, 0
    %v1118 = vsel %vm249, %v1073, 0
    %v1121 = vsel %vm249, %v1076, 0
    %1123 = vmatpush.xpose.msra.mxu0 0.0
    %1124 = vmatpush.xpose.msra.mxu0 0.0
    %1125 = vmatpush.xpose.msra.mxu0 0.0
    %1126 = vmatpush.xpose.msra.mxu0 0.0
    %1127 = vmatpush.xpose.msra.mxu0 0.0
    %1128 = vmatpush.xpose.msra.mxu0 0.0
    %1129 = vmatpush.xpose.msra.mxu0 0.0
    %1130 = vmatpush.xpose.msra.mxu0 0.0
    %1131 = vmatpush.xpose.msra.mxu0 0.0
    %1132 = vmatpush.xpose.msra.mxu0 0.0
    %1133 = vmatpush.xpose.msra.mxu0 0.0
    %1134 = vmatpush.xpose.msra.mxu0 0.0
    %1135 = vmatpush.xpose.msra.mxu0 0.0
    %1136 = vmatpush.xpose.msra.mxu0 0.0
    %1137 = vmatpush.xpose.msra.mxu0 %v1121
    %1138 = vmatpush.xpose.msra.mxu0 %v1118
    %1139 = vmatmul.f32.gmra.mxu0 %v1112
    %v1140 = vpop.f32.mrf.mxu0
    %v1141 = vadd.f32 0.0, %v1140
    %1142 = vmatmul.f32.gmra.mxu0 %v1115
    %v1143 = vpop.f32.mrf.mxu0
    %v1144 = vadd.f32 0.0, %v1143
    %1145 = vdwg.mxu0
    %v1146 = vmul.f32 %v1141, 0.25
    %v1147 = vmul.f32 %v1144, 0.25
    %v1148 = vadd.f32 %v1146, %v80
    %v1149 = vadd.f32 %v1147, %v81
    %v1150 = vsel %vm249, %v1148, -inf
    %1151 = vmax.xlane.f32.xlu0 %v1150
    %v1152 = vpop.xlane.xlu0 %1151
    %v1153 = vsel %vm249, %v1149, -inf
    %1154 = vmax.xlane.f32.xlu0 %v1153
    %v1155 = vpop.xlane.xlu0 %1154
    %v1156 = vsub.f32 %v1148, %v1152
    %v1157 = vsub.f32 %v1149, %v1155
    %v1158 = vmul.f32 %v1156, 1.442695
    %v1159 = vpow.pop %v1158
    %v1160 = vmul.f32 %v1157, 1.442695
    %v1161 = vpow.pop %v1160
    %v1162 = vsel %vm249, %v1159, 0.0
    %1163 = vadd.xlane.f32.xlu0 %v1162
    %v1164 = vpop.xlane.xlu0 %1163
    %v1165 = vsel %vm249, %v1161, 0.0
    %1166 = vadd.xlane.f32.xlu0 %v1165
    %v1167 = vpop.xlane.xlu0 %1166
    %v1168 = vrcp.pop %v1164
    %v1169 = vrcp.pop %v1167
    %v1170 = vmul.f32 %v1159, %v1168
    %v1171 = vmul.f32 %v1161, %v1169
    %v1173 = vsel %vm249, %v1170, 0
    %v1176 = vsel %vm249, %v1171, 0
    %1178 = vmatpush.msra.mxu0 0.0
    %1179 = vmatpush.msra.mxu0 0.0
    %1180 = vmatpush.msra.mxu0 0.0
    %1181 = vmatpush.msra.mxu0 0.0
    %1182 = vmatpush.msra.mxu0 0.0
    %1183 = vmatpush.msra.mxu0 0.0
    %1184 = vmatpush.msra.mxu0 0.0
    %1185 = vmatpush.msra.mxu0 0.0
    %1186 = vmatpush.msra.mxu0 0.0
    %1187 = vmatpush.msra.mxu0 0.0
    %1188 = vmatpush.msra.mxu0 0.0
    %1189 = vmatpush.msra.mxu0 0.0
    %1190 = vmatpush.msra.mxu0 0.0
    %1191 = vmatpush.msra.mxu0 0.0
    %1192 = vmatpush.msra.mxu0 %v1109
    %1193 = vmatpush.msra.mxu0 %v1106
    %1194 = vmatmul.f32.gmra.mxu0 %v1173
    %v1195 = vpop.f32.mrf.mxu0
    %v1196 = vadd.f32 0.0, %v1195
    %1197 = vmatmul.f32.gmra.mxu0 %v1176
    %v1198 = vpop.f32.mrf.mxu0
    %v1199 = vadd.f32 0.0, %v1198
    %1200 = vdwg.mxu0
    %s1201 = scalar_lea.vmem %s10, 48
    %v1202 = vld [vmem:[%s1201] sm:$0xff]
    %v1203 = vld [vmem:[%s1201 + $0x8] sm:$0xff]
    %v1205 = vsel %vm249, %v1196, 0
    %v1208 = vsel %vm249, %v1199, 0
    %1210 = vmatpush.msra.mxu0 0.0
    %1211 = vmatpush.msra.mxu0 0.0
    %1212 = vmatpush.msra.mxu0 0.0
    %1213 = vmatpush.msra.mxu0 0.0
    %1214 = vmatpush.msra.mxu0 0.0
    %1215 = vmatpush.msra.mxu0 0.0
    %1216 = vmatpush.msra.mxu0 0.0
    %1217 = vmatpush.msra.mxu0 0.0
    %1218 = vmatpush.msra.mxu0 0.0
    %1219 = vmatpush.msra.mxu0 0.0
    %1220 = vmatpush.msra.mxu0 0.0
    %1221 = vmatpush.msra.mxu0 0.0
    %1222 = vmatpush.msra.mxu0 0.0
    %1223 = vmatpush.msra.mxu0 0.0
    %1224 = vmatpush.msra.mxu0 %v1203
    %1225 = vmatpush.msra.mxu0 %v1202
    %1226 = vmatmul.f32.gmra.mxu0 %v1205
    %v1227 = vpop.f32.mrf.mxu0
    %v1228 = vadd.f32 0.0, %v1227
    %1229 = vmatmul.f32.gmra.mxu0 %v1208
    %v1230 = vpop.f32.mrf.mxu0
    %v1231 = vadd.f32 0.0, %v1230
    %1232 = vdwg.mxu0
    %v1234 = vsel %vm249, %v1004, 0
    %v1237 = vsel %vm249, %v1007, 0
    %1239 = vmatpush.msra.mxu0 0.0
    %1240 = vmatpush.msra.mxu0 0.0
    %1241 = vmatpush.msra.mxu0 0.0
    %1242 = vmatpush.msra.mxu0 0.0
    %1243 = vmatpush.msra.mxu0 0.0
    %1244 = vmatpush.msra.mxu0 0.0
    %1245 = vmatpush.msra.mxu0 0.0
    %1246 = vmatpush.msra.mxu0 0.0
    %1247 = vmatpush.msra.mxu0 0.0
    %1248 = vmatpush.msra.mxu0 0.0
    %1249 = vmatpush.msra.mxu0 0.0
    %1250 = vmatpush.msra.mxu0 0.0
    %1251 = vmatpush.msra.mxu0 0.0
    %1252 = vmatpush.msra.mxu0 0.0
    %1253 = vmatpush.msra.mxu0 %v1011
    %1254 = vmatpush.msra.mxu0 %v1010
    %1255 = vmatmul.f32.gmra.mxu0 %v1234
    %v1256 = vpop.f32.mrf.mxu0
    %v1257 = vadd.f32 %v1228, %v1256
    %1258 = vmatmul.f32.gmra.mxu0 %v1237
    %v1259 = vpop.f32.mrf.mxu0
    %v1260 = vadd.f32 %v1231, %v1259
    %1261 = vdwg.mxu0
    %s1262 = scalar_lea.vmem %s11, 1
    %v1263 = vld [vmem:[%s1262] sm:$0x1]
    %v1265 = vperm.slane %v1263, 0
    %v1267 = vadd.f32 %v1257, %v1265
    %v1268 = vadd.f32 %v1260, %v1265
    %v1269 = vadd.f32 %v1267, %v809
    %v1270 = vadd.f32 %v1268, %v810
    %s1271 = scalar_lea.vmem %s12, 1
    %v1272 = vld [vmem:[%s1271] sm:$0x1]
    %s1273 = scalar_lea.vmem %s13, 1
    %v1274 = vld [vmem:[%s1273] sm:$0x1]
    %v1275 = vsel %vm86, %v1269, 0.0
    %1276 = vadd.xlane.f32.xlu0 %v1275
    %v1277 = vpop.xlane.xlu0 %1276
    %v1278 = vsel %vm86, %v1270, 0.0
    %1279 = vadd.xlane.f32.xlu0 %v1278
    %v1280 = vpop.xlane.xlu0 %1279
    %v1281 = vmul.f32 %v1277, %v99
    %v1282 = vmul.f32 %v1280, %v99
    %v1283 = vsub.f32 %v1269, %v1281
    %v1284 = vsub.f32 %v1270, %v1282
    %v1285 = vmul.f32 %v1283, %v1283
    %v1286 = vmul.f32 %v1284, %v1284
    %v1287 = vsel %vm86, %v1285, 0.0
    %1288 = vadd.xlane.f32.xlu0 %v1287
    %v1289 = vpop.xlane.xlu0 %1288
    %v1290 = vsel %vm86, %v1286, 0.0
    %1291 = vadd.xlane.f32.xlu0 %v1290
    %v1292 = vpop.xlane.xlu0 %1291
    %v1293 = vmul.f32 %v1289, %v99
    %v1294 = vmul.f32 %v1292, %v99
    %v1295 = vadd.f32 %v1293, 1e-12
    %v1296 = vadd.f32 %v1294, 1e-12
    %v1297 = vrsqrt.pop %v1295
    %v1298 = vmul.f32 %v1297, %v1295
    %v1299 = vmul.f32 %v1298, %v1297
    %v1300 = vmul.f32 0.5, %v1299
    %v1301 = vsub.f32 1.5, %v1300
    %v1302 = vmul.f32 %v1297, %v1301
    %vm1303 = vweird.f32 %v1295
    %vm1304 = vweird.f32 %v1297
    %vm1305 = vmor %vm1303, %vm1304
    %v1306 = vsel %vm1305, %v1297, %v1302
    %v1307 = vrsqrt.pop %v1296
    %v1308 = vmul.f32 %v1307, %v1296
    %v1309 = vmul.f32 %v1308, %v1307
    %v1310 = vmul.f32 0.5, %v1309
    %v1311 = vsub.f32 1.5, %v1310
    %v1312 = vmul.f32 %v1307, %v1311
    %vm1313 = vweird.f32 %v1296
    %vm1314 = vweird.f32 %v1307
    %vm1315 = vmor %vm1313, %vm1314
    %v1316 = vsel %vm1315, %v1307, %v1312
    %v1317 = vmul.f32 %v1283, %v1306
    %v1318 = vmul.f32 %v1284, %v1316
    %v1320 = vperm.slane %v1272, 0
    %v1322 = vmul.f32 %v1317, %v1320
    %v1323 = vmul.f32 %v1318, %v1320
    %v1325 = vperm.slane %v1274, 0
    %v1327 = vadd.f32 %v1322, %v1325
    %v1328 = vadd.f32 %v1323, %v1325
    %s1329 = scalar_lea.vmem %s14, 32
    %v1330 = vld [vmem:[%s1329] sm:$0xff]
    %v1331 = vld [vmem:[%s1329 + $0x8] sm:$0xff]
    %v1332 = vld [vmem:[%s1329 + $0x10] sm:$0xff]
    %v1333 = vld [vmem:[%s1329 + $0x18] sm:$0xff]
    %s1334 = scalar_lea.vmem %s15, 1
    %v1335 = vld [vmem:[%s1334] sm:$0x1]
    %v1337 = vperm.slane %v1335, 0
    %v1340 = vsel %vm86, %v1327, 0
    %v1343 = vsel %vm86, %v1328, 0
    %1345 = vmatpush.msra.mxu0 0.0
    %1346 = vmatpush.msra.mxu0 0.0
    %1347 = vmatpush.msra.mxu0 0.0
    %1348 = vmatpush.msra.mxu0 0.0
    %1349 = vmatpush.msra.mxu0 0.0
    %1350 = vmatpush.msra.mxu0 0.0
    %1351 = vmatpush.msra.mxu0 0.0
    %1352 = vmatpush.msra.mxu0 0.0
    %1353 = vmatpush.msra.mxu0 0.0
    %1354 = vmatpush.msra.mxu0 0.0
    %1355 = vmatpush.msra.mxu0 0.0
    %1356 = vmatpush.msra.mxu0 0.0
    %1357 = vmatpush.msra.mxu0 %v1333
    %1358 = vmatpush.msra.mxu0 %v1332
    %1359 = vmatpush.msra.mxu0 %v1331
    %1360 = vmatpush.msra.mxu0 %v1330
    %1361 = vmatmul.f32.gmra.mxu0 %v1340
    %v1362 = vpop.f32.mrf.mxu0
    %v1363 = vadd.f32 %v1337, %v1362
    %1364 = vmatmul.f32.gmra.mxu0 %v1343
    %v1365 = vpop.f32.mrf.mxu0
    %v1366 = vadd.f32 %v1337, %v1365
    %1367 = vdwg.mxu0
    %v1368 = vmul.f32 %v1363, %v1363
    %v1369 = vmul.f32 %v1366, %v1366
    %v1370 = vmul.f32 %v1363, %v1368
    %v1371 = vmul.f32 %v1366, %v1369
    %v1372 = vmul.f32 %v1370, 0.044715
    %v1373 = vmul.f32 %v1371, 0.044715
    %v1374 = vadd.f32 %v1363, %v1372
    %v1375 = vadd.f32 %v1366, %v1373
    %v1376 = vmul.f32 %v1374, 0.7978846
    %v1377 = vmul.f32 %v1375, 0.7978846
    %v1378 = vtanh.pop %v1376
    %v1379 = vtanh.pop %v1377
    %v1380 = vadd.f32 %v1378, 1.0
    %v1381 = vadd.f32 %v1379, 1.0
    %v1382 = vmul.f32 %v1380, 0.5
    %v1383 = vmul.f32 %v1381, 0.5
    %v1384 = vmul.f32 %v1363, %v1382
    %v1385 = vmul.f32 %v1366, %v1383
    %s1386 = scalar_lea.vmem %s16, 64
    %v1387 = vld [vmem:[%s1386] sm:$0xff]
    %v1388 = vld [vmem:[%s1386 + $0x8] sm:$0xff]
    %v1389 = vld [vmem:[%s1386 + $0x10] sm:$0xff]
    %v1390 = vld [vmem:[%s1386 + $0x18] sm:$0xff]
    %v1391 = vld [vmem:[%s1386 + $0x20] sm:$0xff]
    %v1392 = vld [vmem:[%s1386 + $0x28] sm:$0xff]
    %v1393 = vld [vmem:[%s1386 + $0x30] sm:$0xff]
    %v1394 = vld [vmem:[%s1386 + $0x38] sm:$0xff]
    %s1395 = scalar_lea.vmem %s17, 1
    %v1396 = vld [vmem:[%s1395] sm:$0x1]
    %v1398 = vperm.slane %v1396, 0
    %v1401 = vsel %vm723, %v1384, 0
    %v1404 = vsel %vm723, %v1385, 0
    %1406 = vmatpush.msra.mxu0 0.0
    %1407 = vmatpush.msra.mxu0 0.0
    %1408 = vmatpush.msra.mxu0 0.0
    %1409 = vmatpush.msra.mxu0 0.0
    %1410 = vmatpush.msra.mxu0 0.0
    %1411 = vmatpush.msra.mxu0 0.0
    %1412 = vmatpush.msra.mxu0 0.0
    %1413 = vmatpush.msra.mxu0 0.0
    %1414 = vmatpush.msra.mxu0 %v1394
    %1415 = vmatpush.msra.mxu0 %v1393
    %1416 = vmatpush.msra.mxu0 %v1392
    %1417 = vmatpush.msra.mxu0 %v1391
    %1418 = vmatpush.msra.mxu0 %v1390
    %1419 = vmatpush.msra.mxu0 %v1389
    %1420 = vmatpush.msra.mxu0 %v1388
    %1421 = vmatpush.msra.mxu0 %v1387
    %1422 = vmatmul.f32.gmra.mxu0 %v1401
    %v1423 = vpop.f32.mrf.mxu0
    %v1424 = vadd.f32 %v1398, %v1423
    %1425 = vmatmul.f32.gmra.mxu0 %v1404
    %v1426 = vpop.f32.mrf.mxu0
    %v1427 = vadd.f32 %v1398, %v1426
    %1428 = vdwg.mxu0
    %v1429 = vadd.f32 %v1424, %v1327
    %v1430 = vadd.f32 %v1427, %v1328
    %s1431 = scalar_lea.vmem %s18, 1
    %v1432 = vld [vmem:[%s1431] sm:$0x1]
    %s1433 = scalar_lea.vmem %s19, 1
    %v1434 = vld [vmem:[%s1433] sm:$0x1]
    %v1435 = vsel %vm86, %v1429, 0.0
    %1436 = vadd.xlane.f32.xlu0 %v1435
    %v1437 = vpop.xlane.xlu0 %1436
    %v1438 = vsel %vm86, %v1430, 0.0
    %1439 = vadd.xlane.f32.xlu0 %v1438
    %v1440 = vpop.xlane.xlu0 %1439
    %v1441 = vmul.f32 %v1437, %v99
    %v1442 = vmul.f32 %v1440, %v99
    %v1443 = vsub.f32 %v1429, %v1441
    %v1444 = vsub.f32 %v1430, %v1442
    %v1445 = vmul.f32 %v1443, %v1443
    %v1446 = vmul.f32 %v1444, %v1444
    %v1447 = vsel %vm86, %v1445, 0.0
    %1448 = vadd.xlane.f32.xlu0 %v1447
    %v1449 = vpop.xlane.xlu0 %1448
    %v1450 = vsel %vm86, %v1446, 0.0
    %1451 = vadd.xlane.f32.xlu0 %v1450
    %v1452 = vpop.xlane.xlu0 %1451
    %v1453 = vmul.f32 %v1449, %v99
    %v1454 = vmul.f32 %v1452, %v99
    %v1455 = vadd.f32 %v1453, 1e-12
    %v1456 = vadd.f32 %v1454, 1e-12
    %v1457 = vrsqrt.pop %v1455
    %v1458 = vmul.f32 %v1457, %v1455
    %v1459 = vmul.f32 %v1458, %v1457
    %v1460 = vmul.f32 0.5, %v1459
    %v1461 = vsub.f32 1.5, %v1460
    %v1462 = vmul.f32 %v1457, %v1461
    %vm1463 = vweird.f32 %v1455
    %vm1464 = vweird.f32 %v1457
    %vm1465 = vmor %vm1463, %vm1464
    %v1466 = vsel %vm1465, %v1457, %v1462
    %v1467 = vrsqrt.pop %v1456
    %v1468 = vmul.f32 %v1467, %v1456
    %v1469 = vmul.f32 %v1468, %v1467
    %v1470 = vmul.f32 0.5, %v1469
    %v1471 = vsub.f32 1.5, %v1470
    %v1472 = vmul.f32 %v1467, %v1471
    %vm1473 = vweird.f32 %v1456
    %vm1474 = vweird.f32 %v1467
    %vm1475 = vmor %vm1473, %vm1474
    %v1476 = vsel %vm1475, %v1467, %v1472
    %v1477 = vmul.f32 %v1443, %v1466
    %v1478 = vmul.f32 %v1444, %v1476
    %v1480 = vperm.slane %v1432, 0
    %v1482 = vmul.f32 %v1477, %v1480
    %v1483 = vmul.f32 %v1478, %v1480
    %v1485 = vperm.slane %v1434, 0
    %v1487 = vadd.f32 %v1482, %v1485
    %v1488 = vadd.f32 %v1483, %v1485
    %s1489 = scalar_lea.vmem %s24, 32
    %1490 = vst.msk [vmem:[%s1489] sm:$0xff] %vm86, %v1487
    %1491 = vst.msk [vmem:[%s1489 + $0x8] sm:$0xff] %vm86, %v1488
    %v1492 = vlaneseq
    %v1493 = vshrl.u32 %v1492, 7
    %v1494 = vlaneseq
    %v1495 = vand.u32 %v1494, 127
    %v1496 = vmul.u32 %v1493, 8
    %vm1497 = vcmp.eq.s32.totalorder %v1495, %v1496
    %v1498 = vsel %vm1497, 1, 0
    %v1499 = vcvt.s32.f32 %v1498
    %v1501 = vsel %vm249, %v1499, 0
    %1503 = vmatpush.msra.mxu0 0.0
    %1504 = vmatpush.msra.mxu0 0.0
    %1505 = vmatpush.msra.mxu0 0.0
    %1506 = vmatpush.msra.mxu0 0.0
    %1507 = vmatpush.msra.mxu0 0.0
    %1508 = vmatpush.msra.mxu0 0.0
    %1509 = vmatpush.msra.mxu0 0.0
    %1510 = vmatpush.msra.mxu0 0.0
    %1511 = vmatpush.msra.mxu0 0.0
    %1512 = vmatpush.msra.mxu0 0.0
    %1513 = vmatpush.msra.mxu0 0.0
    %1514 = vmatpush.msra.mxu0 0.0
    %1515 = vmatpush.msra.mxu0 0.0
    %1516 = vmatpush.msra.mxu0 0.0
    %1517 = vmatpush.msra.mxu0 %v1488
    %1518 = vmatpush.msra.mxu0 %v1487
    %1519 = vmatmul.f32.gmra.mxu0 %v1501
    %v1520 = vpop.f32.mrf.mxu0
    %v1521 = vadd.f32 0.0, %v1520
    %1522 = vdwg.mxu0
    %v1523 = vld [vmem:[%s20] sm:$0xff]
    %v1524 = vld [vmem:[%s20 + $0x8] sm:$0xff]
    %v1525 = vld [vmem:[%s20 + $0x10] sm:$0xff]
    %v1526 = vld [vmem:[%s20 + $0x18] sm:$0xff]
    %v1527 = vld [vmem:[%s21] sm:$0x1]
    %v1529 = vperm.slane %v1527, 0
    %v1532 = vsel %vm86, %v1521, 0
    %1534 = vmatpush.msra.mxu0 0.0
    %1535 = vmatpush.msra.mxu0 0.0
    %1536 = vmatpush.msra.mxu0 0.0
    %1537 = vmatpush.msra.mxu0 0.0
    %1538 = vmatpush.msra.mxu0 0.0
    %1539 = vmatpush.msra.mxu0 0.0
    %1540 = vmatpush.msra.mxu0 0.0
    %1541 = vmatpush.msra.mxu0 0.0
    %1542 = vmatpush.msra.mxu0 0.0
    %1543 = vmatpush.msra.mxu0 0.0
    %1544 = vmatpush.msra.mxu0 0.0
    %1545 = vmatpush.msra.mxu0 0.0
    %1546 = vmatpush.msra.mxu0 %v1526
    %1547 = vmatpush.msra.mxu0 %v1525
    %1548 = vmatpush.msra.mxu0 %v1524
    %1549 = vmatpush.msra.mxu0 %v1523
    %1550 = vmatmul.f32.gmra.mxu0 %v1532
    %v1551 = vpop.f32.mrf.mxu0
    %v1552 = vadd.f32 %v1529, %v1551
    %1553 = vdwg.mxu0
    %v1554 = vtanh.pop %v1552
    %v1555 = vld [vmem:[%s22] sm:$0xff]
    %v1556 = vld [vmem:[%s22 + $0x8] sm:$0xff]
    %v1557 = vld [vmem:[%s22 + $0x10] sm:$0xff]
    %v1558 = vld [vmem:[%s22 + $0x18] sm:$0xff]
    %v1559 = vld [vmem:[%s23] sm:$0x1]
    %v1561 = vperm.slane %v1559, 0
    %v1564 = vsel %vm86, %v1554, 0
    %1566 = vmatpush.msra.mxu0 0.0
    %1567 = vmatpush.msra.mxu0 0.0
    %1568 = vmatpush.msra.mxu0 0.0
    %1569 = vmatpush.msra.mxu0 0.0
    %1570 = vmatpush.msra.mxu0 0.0
    %1571 = vmatpush.msra.mxu0 0.0
    %1572 = vmatpush.msra.mxu0 0.0
    %1573 = vmatpush.msra.mxu0 0.0
    %1574 = vmatpush.msra.mxu0 0.0
    %1575 = vmatpush.msra.mxu0 0.0
    %1576 = vmatpush.msra.mxu0 0.0
    %1577 = vmatpush.msra.mxu0 0.0
    %1578 = vmatpush.msra.mxu0 %v1558
    %1579 = vmatpush.msra.mxu0 %v1557
    %1580 = vmatpush.msra.mxu0 %v1556
    %1581 = vmatpush.msra.mxu0 %v1555
    %1582 = vmatmul.f32.gmra.mxu0 %v1564
    %v1583 = vpop.f32.mrf.mxu0
    %v1584 = vadd.f32 %v1561, %v1583
    %1585 = vdwg.mxu0
    %vm1586 = vcmask 17408
    %1587 = vst.msk [vmem:[#allocation2] sm:$0x3] %vm1586, %v1584
    // Predicated region
    $region98: #{teacher_forward.1} parent=1 // pred_check
      _
    $region99: #{teacher_forward.1} parent=1 // pred_check_branch
      %1589 = sbr.rel (0) target = $region101
    $region100: #{teacher_forward.1} parent=1 // pred_region
      _
    $region101: #{teacher_forward.1} parent=1 // pred_fallthru
      _
    // Predicated region
    $region102: #{teacher_forward.1} parent=1 // pred_check
      _
    $region103: #{teacher_forward.1} parent=1 // pred_check_branch
      %1591 = sbr.rel (0) target = $region105
    $region104: #{teacher_forward.1} parent=1 // pred_region
      %1593 = vsyncadd [#allocation3], 0
      %s1595 = sshll.u32 [#allocation2], 4
      %s1596 = int_to_ptr.vmem [resolvable:$true] %s1595
      %s1597 = sshll.u32 %s25, 4
      %s1598 = int_to_ptr.hbm [resolvable:$true] %s1597
      %1600 = dma.vmem_to_hbm [thread:$0]  %s1596, 32, %s1598, [#allocation3]
    $region105: #{teacher_forward.1} parent=1 // pred_fallthru
      _
    // Predicated region
    $region106: #{teacher_forward.1} parent=1 // pred_check
      _
    $region107: #{teacher_forward.1} parent=1 // pred_check_branch
      %1602 = sbr.rel (0) target = $region109
    $region108: #{teacher_forward.1} parent=1 // pred_region
      _
    $region109: #{teacher_forward.1} parent=1 // pred_fallthru
      _
    // Predicated region
    $region110: #{teacher_forward.1} parent=1 // pred_check
      _
    $region111: #{teacher_forward.1} parent=1 // pred_check_branch
      %1604 = sbr.rel (0) target = $region113
    $region112: #{teacher_forward.1} parent=1 // pred_region
      %1606 = dma.done [#allocation3], 32
    $region113: #{teacher_forward.1} parent=1 // pred_fallthru
      _
    %1607 = vsyncpa [#allocation3], 1

</llo_original>
